<compile_context>
chip_gen: v7x
topology: tpu7x:2x2x1
jax: 0.10.0
libtpu: 0.0.40
codegen_flags: <defaults>
</compile_context>

<pallas_src>
import functools

import jax
import jax.numpy as jnp
from jax.experimental import pallas as pl
from jax.experimental.pallas import tpu as pltpu

# Set to jnp.bfloat16 on v6e/v7x for MXU peak + halved weight VMEM/HBM traffic
# (re-validate the 2e-3 tolerance before enabling).
WEIGHT_DTYPE = jnp.float32


def _vmem_limit_bytes():
    # Generation-aware VMEM budget: ~75% of physical, capped at 100 MiB
    # (v5e/v6e: 128 MiB -> 96 MiB, v7x: 64 MiB -> 48 MiB). Safe fallback 48 MiB.
    cap = None
    try:
        cap = getattr(pltpu.get_tpu_info(), "vmem_capacity_bytes", None)
    except Exception:
        cap = None
    if not cap:
        return 48 * 1024 * 1024
    return min(int(cap) * 3 // 4, 100 * 1024 * 1024)


# ------------------------------ fused kernel ------------------------------

def _transformer_kernel(
        x_ref, wl1_ref, wl2_ref, wlout_ref,
        wqkv_ref, bqkv_ref, wo_ref, bo_ref, w1_ref, w2_ref, w3_ref,
        o_ref, h_scratch,
        *, num_heads, d_model, num_layers):
    f32 = jnp.float32
    li = pl.program_id(0)   # layer index (outer, sequential)
    c = pl.program_id(1)    # context position (inner; independent attention batch)
    H = num_heads
    hd = d_model // H
    scale = 1.0 / float(hd) ** 0.5

    def mm(a, b):
        # MXU matmul; activations cast to the weight dtype at the MXU boundary,
        # accumulation in f32 (bf16 weights on v6e/v7x; elementwise stays f32).
        return jnp.dot(a.astype(b.dtype), b, preferred_element_type=f32)

    def layernorm(t):  # elementwise_affine=False, eps=1e-5
        mu = jnp.mean(t, axis=-1, keepdims=True)
        cen = t - mu
        var = jnp.mean(cen * cen, axis=-1, keepdims=True)
        return cen * jax.lax.rsqrt(var + 1e-5)

    # ---- token + positional embedding (first layer step only) ----
    @pl.when(li == 0)
    def _():
        emb = mm(x_ref[0], wl1_ref[...]) + wl2_ref[0].astype(f32)   # (bs, d)
        h_scratch[c] = emb

    h = h_scratch[c]                                # (bs, d) residual stream, f32

    # ---- transformer block `li` on ctx slice `c` (streamed weights) ----
    x1 = layernorm(h)

    # fused QKV: one (bs, d) x (d, 3d) MXU matmul + one bias epilogue
    qkv = mm(x1, wqkv_ref[0]) + bqkv_ref[0].astype(f32)
    q = qkv[:, 0 * d_model:1 * d_model]
    k = qkv[:, 1 * d_model:2 * d_model]
    v = qkv[:, 2 * d_model:3 * d_model]

    # Multi-head attention over the bs axis (PyTorch seq-first MHA: L=bs, N=ctx).
    # Per head: QK^T and P.V are plain MXU matmuls; softmax stats stay in f32.
    # TODO(synk): attn_mask is always None in this port; masked attention not implemented.
    heads = []
    for hh in range(H):
        s0 = hh * hd
        qh = q[:, s0:s0 + hd]
        kh = k[:, s0:s0 + hd]
        vh = v[:, s0:s0 + hd]
        s = jax.lax.dot_general(qh, kh, (((1,), (1,)), ((), ())),
                                preferred_element_type=f32) * scale   # (bs, bs)
        s = s - jnp.max(s, axis=-1, keepdims=True)
        p = jnp.exp(s)
        # Exact reciprocal keeps the 2e-3 check airtight; use
        # pl.reciprocal(l, approx=True) in production to route the divide to the EUP.
        p = p / jnp.sum(p, axis=-1, keepdims=True)
        heads.append(mm(p, vh))                                       # (bs, hd)
    att = jnp.concatenate(heads, axis=-1)                             # (bs, d)

    # out-projection + bias + residual fused in the epilogue
    h = h + mm(att, wo_ref[0]) + bo_ref[0].astype(f32)

    # SwiGLU feed-forward + residual
    y = layernorm(h)
    x1f = mm(y, w1_ref[0])
    h1 = x1f * jax.nn.sigmoid(x1f)                                    # SiLU
    gate = mm(h1, w2_ref[0])
    h = h + mm(h1 * gate, w3_ref[0])
    # TODO(synk): nn.Dropout / MHA dropout are identity in eval mode; no RNG dropout here.

    h_scratch[c] = h

    # ---- output head: lout matmul K-split over the ctx grid axis ----
    @pl.when(li == num_layers - 1)
    def _():
        partial = mm(h, wlout_ref[0]).astype(o_ref.dtype)             # (bs, n_out)

        @pl.when(c == 0)
        def _():
            o_ref[...] = partial

        @pl.when(c != 0)
        def _():
            o_ref[...] = o_ref[...] + partial
    # TODO(synk): for v7x's 2nd TensorCore, make the ctx axis "parallel" with a
    # per-ctx partial output block and a wrapper-side sum; also keep n_out lane-dense
    # (multiple of 128) once output dims scale up.


# --------------------------- forward (Pallas) ---------------------------

def transformer_forward(x, cond, params, cfg):
    ctx, d = cfg['ctx'], cfg['d_model']
    L, H = cfg['num_layers'], cfg['num_heads']
    n_out = cfg['seqlen'] * cfg['action_dim']
    in_dim = cfg['input_dim']
    bs = x.shape[0] // ctx

    # plain-JAX glue: assemble the input and present it ctx-major so each grid
    # step's BlockSpec picks one (bs, input_dim) slab.
    x3 = x.reshape(bs, ctx, -1)
    c3 = jnp.broadcast_to(cond[:, None, :], (bs, ctx, cond.shape[-1]))
    xin = jnp.concatenate([x3, c3], axis=-1)                   # (bs, ctx, input_dim)
    xin = jnp.transpose(xin, (1, 0, 2)).astype(jnp.float32)    # (ctx, bs, input_dim)

    wl2 = params['W_l2_t'].reshape(ctx, 1, d)                  # pos-emb row per ctx block
    wlout = params['W_lout_t'].reshape(ctx, d, n_out)          # K-split lout weight

    def layer_spec(a):   # stream exactly layer li's slab
        nd = a.ndim
        return pl.BlockSpec((1,) + a.shape[1:], lambda li, c: (li,) + (0,) * (nd - 1))

    def ctx_spec(a):     # stream exactly ctx block c's slab
        nd = a.ndim
        return pl.BlockSpec((1,) + a.shape[1:], lambda li, c: (c,) + (0,) * (nd - 1))

    in_specs = [
        ctx_spec(xin),                                          # x (used at li==0)
        pl.BlockSpec((in_dim, d), lambda li, c: (0, 0)),        # W_l1^T (resident)
        ctx_spec(wl2),                                          # W_l2^T row c
        ctx_spec(wlout),                                        # W_lout^T slab c
        layer_spec(params['Wqkv_t']),
        layer_spec(params['bqkv']),
        layer_spec(params['Wo_t']),
        layer_spec(params['bo']),
        layer_spec(params['W1_t']),
        layer_spec(params['W2_t']),
        layer_spec(params['W3_t']),
    ]

    kernel = functools.partial(_transformer_kernel,
                               num_heads=H, d_model=d, num_layers=L)

    out = pl.pallas_call(
        kernel,
        grid=(L, ctx),
        in_specs=in_specs,
        out_specs=pl.BlockSpec((bs, n_out), lambda li, c: (0, 0)),
        out_shape=jax.ShapeDtypeStruct((bs, n_out), jnp.float32),
        scratch_shapes=[pltpu.VMEM((ctx, bs, d), jnp.float32)],   # persistent residual stream
        compiler_params=pltpu.CompilerParams(
            dimension_semantics=("arbitrary", "arbitrary"),
            vmem_limit_bytes=_vmem_limit_bytes()),
    )(xin, params['W_l1_t'], wl2, wlout,
      params['Wqkv_t'], params['bqkv'], params['Wo_t'], params['bo'],
      params['W1_t'], params['W2_t'], params['W3_t'])

    return out.reshape(bs, cfg['seqlen'], cfg['action_dim'])


# ---------------------- pure-JAX reference (check) ----------------------

def ref_forward(x, cond, params, cfg):
    ctx, d, H, L = cfg['ctx'], cfg['d_model'], cfg['num_heads'], cfg['num_layers']
    hd = d // H
    bs = x.shape[0] // ctx
    f32 = jnp.float32

    x3 = x.reshape(bs, ctx, -1)
    c3 = jnp.tile(cond[:, None, :], (1, ctx, 1))
    x3 = jnp.concatenate([x3, c3], axis=-1)
    pos = jnp.tile(jnp.eye(ctx, dtype=f32)[None], (bs, 1, 1))     # one-hot positions
    h = x3 @ params['W_l1_t'].astype(f32) + pos @ params['W_l2_t'].astype(f32)

    def ln(t):
        m = t.mean(-1, keepdims=True)
        v = ((t - m) ** 2).mean(-1, keepdims=True)
        return (t - m) / jnp.sqrt(v + 1e-5)

    for l in range(L):
        x1 = ln(h)
        qkv = x1 @ params['Wqkv_t'][l].astype(f32) + params['bqkv'][l, 0]
        q, k, v = qkv[..., :d], qkv[..., d:2 * d], qkv[..., 2 * d:]
        qh = q.reshape(bs, ctx, H, hd)
        kh = k.reshape(bs, ctx, H, hd)
        vh = v.reshape(bs, ctx, H, hd)
        s = jnp.einsum('ichd,jchd->chij', qh, kh) / (hd ** 0.5)
        a = jax.nn.softmax(s, axis=-1)
        o = jnp.einsum('chij,jchd->ichd', a, vh).reshape(bs, ctx, d)
        h = h + (o @ params['Wo_t'][l].astype(f32) + params['bo'][l, 0])
        y = ln(h)
        x1f = y @ params['W1_t'][l].astype(f32)
        h1 = x1f * jax.nn.sigmoid(x1f)
        gate = h1 @ params['W2_t'][l].astype(f32)
        h = h + (h1 * gate) @ params['W3_t'][l].astype(f32)

    out = h.reshape(bs, ctx * d) @ params['W_lout_t'].astype(f32)
    return out.reshape(bs, cfg['seqlen'], cfg['action_dim'])


# -------------------------------- params --------------------------------

def init_params(key, cfg, w_dtype=WEIGHT_DTYPE):
    d, hdim, ctx, L = cfg['d_model'], cfg['hidden_dim'], cfg['ctx'], cfg['num_layers']
    n_out = cfg['seqlen'] * cfg['action_dim']
    keys = iter(jax.random.split(key, 10))

    def w(shape, scale=0.1):
        return (jax.random.normal(next(keys), shape, jnp.float32) * scale).astype(w_dtype)

    def b(shape, scale=0.02):
        return jax.random.normal(next(keys), shape, jnp.float32) * scale   # biases stay f32

    return {
        # weights stored pre-transposed (contraction dim first); per-layer weights
        # stacked along a leading num_layers axis so the kernel streams exactly one
        # layer's slab per grid step.
        'W_l1_t':   w((cfg['input_dim'], d)),     # Linear(input_dim, d, bias=False)^T
        'W_l2_t':   w((ctx, d)),                  # Linear(ctx, d, bias=False)^T
        'W_lout_t': w((ctx * d, n_out)),          # Linear(d*ctx, seqlen*action_dim)^T
        'Wqkv_t':   w((L, d, 3 * d)),             # MHA in_proj_weight^T (fused q|k|v)
        'bqkv':     b((L, 1, 3 * d)),             # MHA in_proj_bias
        'Wo_t':     w((L, d, d)),                 # MHA out_proj.weight^T
        'bo':       b((L, 1, d)),                 # MHA out_proj.bias
        'W1_t':     w((L, d, hdim)),              # SwiGLU l1^T
        'W2_t':     w((L, hdim, hdim)),           # SwiGLU l2^T
        'W3_t':     w((L, hdim, hdim)),           # SwiGLU l3^T (output_dim == hidden_dim)
    }


# --------------------------------- main ----------------------------------

if __name__ == "__main__":
    # context_length (ctor arg) = 3  ->  self.context_length = 4
    cfg = dict(input_dim=32, d_model=32, hidden_dim=32, output_dim=32,
               num_layers=2, num_heads=4, seqlen=8, action_dim=2, ctx=4)
    bs = 2
    cond_feat = 8
    x_feat = cfg['input_dim'] - cond_feat   # 24

    key = jax.random.PRNGKey(0)
    kx, kc, kp = jax.random.split(key, 3)
    x = jax.random.normal(kx, (bs * cfg['ctx'], x_feat), jnp.float32)   # (8, 24)
    cond = jax.random.normal(kc, (bs, cond_feat), jnp.float32)          # (2, 8)
    params = init_params(kp, cfg)

    out = jax.block_until_ready(transformer_forward(x, cond, params, cfg))
    ref = jax.block_until_ready(ref_forward(x, cond, params, cfg))

    assert out.shape == (bs, cfg['seqlen'], cfg['action_dim']), out.shape
    assert jnp.allclose(out, ref, rtol=2e-3, atol=2e-3), (out, ref)
    print("KERNEL_OK")
</pallas_src>

<mosaic_0001>
module attributes {stable_mosaic.version = 11 : i64} {
  func.func @_transformer_kernel(%arg0: i32, %arg1: i32, %arg2: memref<1x2x32xf32, #tpu.memory_space<vmem>>, %arg3: memref<32x32xf32, #tpu.memory_space<vmem>>, %arg4: memref<1x1x32xf32, #tpu.memory_space<vmem>>, %arg5: memref<1x32x16xf32, #tpu.memory_space<vmem>>, %arg6: memref<1x32x96xf32, #tpu.memory_space<vmem>>, %arg7: memref<1x1x96xf32, #tpu.memory_space<vmem>>, %arg8: memref<1x32x32xf32, #tpu.memory_space<vmem>>, %arg9: memref<1x1x32xf32, #tpu.memory_space<vmem>>, %arg10: memref<1x32x32xf32, #tpu.memory_space<vmem>>, %arg11: memref<1x32x32xf32, #tpu.memory_space<vmem>>, %arg12: memref<1x32x32xf32, #tpu.memory_space<vmem>>, %arg13: memref<2x16xf32, #tpu.memory_space<vmem>>, %arg14: memref<4x2x32xf32, #tpu.memory_space<vmem>>) attributes {dimension_semantics = [#tpu.dimension_semantics<arbitrary>, #tpu.dimension_semantics<arbitrary>], iteration_bounds = array<i64: 2, 4>, scalar_prefetch = 0 : i64, scratch_operands = 1 : i64, tpu.core_type = #tpu.core_type<tc>, window_params = [{transform_indices = @transform_0, window_bounds = array<i64: 1, 2, 32>}, {pipeline_mode = #tpu.pipeline_mode<synchronous>, transform_indices = @transform_1, window_bounds = array<i64: 32, 32>}, {transform_indices = @transform_2, window_bounds = array<i64: 1, 1, 32>}, {transform_indices = @transform_3, window_bounds = array<i64: 1, 32, 16>}, {transform_indices = @transform_4, window_bounds = array<i64: 1, 32, 96>}, {transform_indices = @transform_5, window_bounds = array<i64: 1, 1, 96>}, {transform_indices = @transform_6, window_bounds = array<i64: 1, 32, 32>}, {transform_indices = @transform_7, window_bounds = array<i64: 1, 1, 32>}, {transform_indices = @transform_8, window_bounds = array<i64: 1, 32, 32>}, {transform_indices = @transform_9, window_bounds = array<i64: 1, 32, 32>}, {transform_indices = @transform_10, window_bounds = array<i64: 1, 32, 32>}, {pipeline_mode = #tpu.pipeline_mode<synchronous>, transform_indices = @transform_11, window_bounds = array<i64: 2, 16>}]} {
    %c0_i32 = arith.constant 0 : i32
    %0 = arith.cmpi eq, %arg0, %c0_i32 : i32
    %1 = arith.extui %0 : i1 to i32
    %c0_i32_0 = arith.constant 0 : i32
    %2 = arith.cmpi ne, %1, %c0_i32_0 : i32
    scf.if %2 {
      %c0_61 = arith.constant 0 : index
      %c0_62 = arith.constant 0 : index
      %c0_63 = arith.constant 0 : index
      %145 = vector.load %arg2[%c0_61, %c0_62, %c0_63] : memref<1x2x32xf32, #tpu.memory_space<vmem>>, vector<1x2x32xf32>
      %146 = vector.shape_cast %145 : vector<1x2x32xf32> to vector<2x32xf32>
      %c0_64 = arith.constant 0 : index
      %c0_65 = arith.constant 0 : index
      %147 = vector.load %arg3[%c0_64, %c0_65] : memref<32x32xf32, #tpu.memory_space<vmem>>, vector<32x32xf32>
      %cst_66 = arith.constant dense<0.000000e+00> : vector<2x32xf32>
      %148 = tpu.matmul %146, %147, %cst_66 {dimension_numbers = #tpu.dot_dimension_numbers<[1], [0], [0], [1], [0, 0, 1, 1], [], []>} : vector<2x32xf32>, vector<32x32xf32>, vector<2x32xf32> -> vector<2x32xf32>
      %c0_67 = arith.constant 0 : index
      %c0_68 = arith.constant 0 : index
      %c0_69 = arith.constant 0 : index
      %149 = vector.load %arg4[%c0_67, %c0_68, %c0_69] : memref<1x1x32xf32, #tpu.memory_space<vmem>>, vector<1x1x32xf32>
      %150 = vector.shape_cast %149 : vector<1x1x32xf32> to vector<1x32xf32>
      %151 = vector.broadcast %150 : vector<1x32xf32> to vector<2x32xf32>
      %152 = arith.addf %148, %151 : vector<2x32xf32>
      %153 = arith.index_cast %arg1 : i32 to index
      %c0_70 = arith.constant 0 : index
      %c0_71 = arith.constant 0 : index
      %154 = vector.load %arg14[%153, %c0_70, %c0_71] : memref<4x2x32xf32, #tpu.memory_space<vmem>>, vector<1x2x32xf32>
      %155 = vector.shape_cast %154 : vector<1x2x32xf32> to vector<2x32xf32>
      %156 = vector.shape_cast %152 : vector<2x32xf32> to vector<1x2x32xf32>
      tpu.vector_store %arg14[%153, %c0_70, %c0_71], %156 {strides = array<i32>} : memref<4x2x32xf32, #tpu.memory_space<vmem>>, vector<1x2x32xf32>,
    } else {
    }
    %3 = arith.index_cast %arg1 : i32 to index
    %c0 = arith.constant 0 : index
    %c0_1 = arith.constant 0 : index
    %4 = vector.load %arg14[%3, %c0, %c0_1] : memref<4x2x32xf32, #tpu.memory_space<vmem>>, vector<1x2x32xf32>
    %5 = vector.shape_cast %4 : vector<1x2x32xf32> to vector<2x32xf32>
    %cst = arith.constant dense<0.000000e+00> : vector<2xf32>
    %6 = vector.multi_reduction <add>, %5, %cst [1] : vector<2x32xf32> to vector<2xf32>
    %7 = vector.shape_cast %6 : vector<2xf32> to vector<2x1xf32>
    %cst_2 = arith.constant 3.200000e+01 : f32
    %8 = vector.broadcast %cst_2 : f32 to vector<2x1xf32>
    %9 = arith.divf %7, %8 : vector<2x1xf32>
    %10 = vector.broadcast %9 : vector<2x1xf32> to vector<2x32xf32>
    %11 = arith.subf %5, %10 : vector<2x32xf32>
    %12 = arith.mulf %11, %11 : vector<2x32xf32>
    %cst_3 = arith.constant dense<0.000000e+00> : vector<2xf32>
    %13 = vector.multi_reduction <add>, %12, %cst_3 [1] : vector<2x32xf32> to vector<2xf32>
    %14 = vector.shape_cast %13 : vector<2xf32> to vector<2x1xf32>
    %cst_4 = arith.constant 3.200000e+01 : f32
    %15 = vector.broadcast %cst_4 : f32 to vector<2x1xf32>
    %16 = arith.divf %14, %15 : vector<2x1xf32>
    %cst_5 = arith.constant 9.99999974E-6 : f32
    %17 = vector.broadcast %cst_5 : f32 to vector<2x1xf32>
    %18 = arith.addf %16, %17 : vector<2x1xf32>
    %19 = math.rsqrt %18 : vector<2x1xf32>
    %20 = vector.broadcast %19 : vector<2x1xf32> to vector<2x32xf32>
    %21 = arith.mulf %11, %20 : vector<2x32xf32>
    %c0_6 = arith.constant 0 : index
    %c0_7 = arith.constant 0 : index
    %c0_8 = arith.constant 0 : index
    %22 = vector.load %arg6[%c0_6, %c0_7, %c0_8] : memref<1x32x96xf32, #tpu.memory_space<vmem>>, vector<1x32x96xf32>
    %23 = vector.shape_cast %22 : vector<1x32x96xf32> to vector<32x96xf32>
    %cst_9 = arith.constant dense<0.000000e+00> : vector<2x96xf32>
    %24 = tpu.matmul %21, %23, %cst_9 {dimension_numbers = #tpu.dot_dimension_numbers<[1], [0], [0], [1], [0, 0, 1, 1], [], []>} : vector<2x32xf32>, vector<32x96xf32>, vector<2x96xf32> -> vector<2x96xf32>
    %c0_10 = arith.constant 0 : index
    %c0_11 = arith.constant 0 : index
    %c0_12 = arith.constant 0 : index
    %25 = vector.load %arg7[%c0_10, %c0_11, %c0_12] : memref<1x1x96xf32, #tpu.memory_space<vmem>>, vector<1x1x96xf32>
    %26 = vector.shape_cast %25 : vector<1x1x96xf32> to vector<1x96xf32>
    %27 = vector.broadcast %26 : vector<1x96xf32> to vector<2x96xf32>
    %28 = arith.addf %24, %27 : vector<2x96xf32>
    %29 = vector.extract_strided_slice %28 {offsets = [0, 0], sizes = [2, 32], strides = [1, 1]} : vector<2x96xf32> to vector<2x32xf32>
    %30 = vector.extract_strided_slice %28 {offsets = [0, 32], sizes = [2, 32], strides = [1, 1]} : vector<2x96xf32> to vector<2x32xf32>
    %31 = vector.extract_strided_slice %28 {offsets = [0, 64], sizes = [2, 32], strides = [1, 1]} : vector<2x96xf32> to vector<2x32xf32>
    %32 = vector.extract_strided_slice %29 {offsets = [0, 0], sizes = [2, 8], strides = [1, 1]} : vector<2x32xf32> to vector<2x8xf32>
    %33 = vector.extract_strided_slice %30 {offsets = [0, 0], sizes = [2, 8], strides = [1, 1]} : vector<2x32xf32> to vector<2x8xf32>
    %34 = vector.extract_strided_slice %31 {offsets = [0, 0], sizes = [2, 8], strides = [1, 1]} : vector<2x32xf32> to vector<2x8xf32>
    %cst_13 = arith.constant dense<0.000000e+00> : vector<2x2xf32>
    %35 = tpu.matmul %32, %33, %cst_13 {dimension_numbers = #tpu.dot_dimension_numbers<[1], [1], [0], [0], [0, 0, 1, 0], [], []>} : vector<2x8xf32>, vector<2x8xf32>, vector<2x2xf32> -> vector<2x2xf32>
    %cst_14 = arith.constant 0.353553385 : f32
    %36 = vector.broadcast %cst_14 : f32 to vector<2x2xf32>
    %37 = arith.mulf %35, %36 : vector<2x2xf32>
    %cst_15 = arith.constant dense<0xFF800000> : vector<2xf32>
    %38 = vector.multi_reduction <maximumf>, %37, %cst_15 [1] : vector<2x2xf32> to vector<2xf32>
    %39 = vector.shape_cast %38 : vector<2xf32> to vector<2x1xf32>
    %40 = vector.broadcast %39 : vector<2x1xf32> to vector<2x2xf32>
    %41 = arith.subf %37, %40 : vector<2x2xf32>
    %42 = math.exp %41 : vector<2x2xf32>
    %cst_16 = arith.constant dense<0.000000e+00> : vector<2xf32>
    %43 = vector.multi_reduction <add>, %42, %cst_16 [1] : vector<2x2xf32> to vector<2xf32>
    %44 = vector.shape_cast %43 : vector<2xf32> to vector<2x1xf32>
    %45 = vector.broadcast %44 : vector<2x1xf32> to vector<2x2xf32>
    %46 = arith.divf %42, %45 : vector<2x2xf32>
    %cst_17 = arith.constant dense<0.000000e+00> : vector<2x8xf32>
    %47 = tpu.matmul %46, %34, %cst_17 {dimension_numbers = #tpu.dot_dimension_numbers<[1], [0], [0], [1], [0, 0, 1, 1], [], []>} : vector<2x2xf32>, vector<2x8xf32>, vector<2x8xf32> -> vector<2x8xf32>
    %48 = vector.extract_strided_slice %29 {offsets = [0, 8], sizes = [2, 8], strides = [1, 1]} : vector<2x32xf32> to vector<2x8xf32>
    %49 = vector.extract_strided_slice %30 {offsets = [0, 8], sizes = [2, 8], strides = [1, 1]} : vector<2x32xf32> to vector<2x8xf32>
    %50 = vector.extract_strided_slice %31 {offsets = [0, 8], sizes = [2, 8], strides = [1, 1]} : vector<2x32xf32> to vector<2x8xf32>
    %cst_18 = arith.constant dense<0.000000e+00> : vector<2x2xf32>
    %51 = tpu.matmul %48, %49, %cst_18 {dimension_numbers = #tpu.dot_dimension_numbers<[1], [1], [0], [0], [0, 0, 1, 0], [], []>} : vector<2x8xf32>, vector<2x8xf32>, vector<2x2xf32> -> vector<2x2xf32>
    %cst_19 = arith.constant 0.353553385 : f32
    %52 = vector.broadcast %cst_19 : f32 to vector<2x2xf32>
    %53 = arith.mulf %51, %52 : vector<2x2xf32>
    %cst_20 = arith.constant dense<0xFF800000> : vector<2xf32>
    %54 = vector.multi_reduction <maximumf>, %53, %cst_20 [1] : vector<2x2xf32> to vector<2xf32>
    %55 = vector.shape_cast %54 : vector<2xf32> to vector<2x1xf32>
    %56 = vector.broadcast %55 : vector<2x1xf32> to vector<2x2xf32>
    %57 = arith.subf %53, %56 : vector<2x2xf32>
    %58 = math.exp %57 : vector<2x2xf32>
    %cst_21 = arith.constant dense<0.000000e+00> : vector<2xf32>
    %59 = vector.multi_reduction <add>, %58, %cst_21 [1] : vector<2x2xf32> to vector<2xf32>
    %60 = vector.shape_cast %59 : vector<2xf32> to vector<2x1xf32>
    %61 = vector.broadcast %60 : vector<2x1xf32> to vector<2x2xf32>
    %62 = arith.divf %58, %61 : vector<2x2xf32>
    %cst_22 = arith.constant dense<0.000000e+00> : vector<2x8xf32>
    %63 = tpu.matmul %62, %50, %cst_22 {dimension_numbers = #tpu.dot_dimension_numbers<[1], [0], [0], [1], [0, 0, 1, 1], [], []>} : vector<2x2xf32>, vector<2x8xf32>, vector<2x8xf32> -> vector<2x8xf32>
    %64 = vector.extract_strided_slice %29 {offsets = [0, 16], sizes = [2, 8], strides = [1, 1]} : vector<2x32xf32> to vector<2x8xf32>
    %65 = vector.extract_strided_slice %30 {offsets = [0, 16], sizes = [2, 8], strides = [1, 1]} : vector<2x32xf32> to vector<2x8xf32>
    %66 = vector.extract_strided_slice %31 {offsets = [0, 16], sizes = [2, 8], strides = [1, 1]} : vector<2x32xf32> to vector<2x8xf32>
    %cst_23 = arith.constant dense<0.000000e+00> : vector<2x2xf32>
    %67 = tpu.matmul %64, %65, %cst_23 {dimension_numbers = #tpu.dot_dimension_numbers<[1], [1], [0], [0], [0, 0, 1, 0], [], []>} : vector<2x8xf32>, vector<2x8xf32>, vector<2x2xf32> -> vector<2x2xf32>
    %cst_24 = arith.constant 0.353553385 : f32
    %68 = vector.broadcast %cst_24 : f32 to vector<2x2xf32>
    %69 = arith.mulf %67, %68 : vector<2x2xf32>
    %cst_25 = arith.constant dense<0xFF800000> : vector<2xf32>
    %70 = vector.multi_reduction <maximumf>, %69, %cst_25 [1] : vector<2x2xf32> to vector<2xf32>
    %71 = vector.shape_cast %70 : vector<2xf32> to vector<2x1xf32>
    %72 = vector.broadcast %71 : vector<2x1xf32> to vector<2x2xf32>
    %73 = arith.subf %69, %72 : vector<2x2xf32>
    %74 = math.exp %73 : vector<2x2xf32>
    %cst_26 = arith.constant dense<0.000000e+00> : vector<2xf32>
    %75 = vector.multi_reduction <add>, %74, %cst_26 [1] : vector<2x2xf32> to vector<2xf32>
    %76 = vector.shape_cast %75 : vector<2xf32> to vector<2x1xf32>
    %77 = vector.broadcast %76 : vector<2x1xf32> to vector<2x2xf32>
    %78 = arith.divf %74, %77 : vector<2x2xf32>
    %cst_27 = arith.constant dense<0.000000e+00> : vector<2x8xf32>
    %79 = tpu.matmul %78, %66, %cst_27 {dimension_numbers = #tpu.dot_dimension_numbers<[1], [0], [0], [1], [0, 0, 1, 1], [], []>} : vector<2x2xf32>, vector<2x8xf32>, vector<2x8xf32> -> vector<2x8xf32>
    %80 = vector.extract_strided_slice %29 {offsets = [0, 24], sizes = [2, 8], strides = [1, 1]} : vector<2x32xf32> to vector<2x8xf32>
    %81 = vector.extract_strided_slice %30 {offsets = [0, 24], sizes = [2, 8], strides = [1, 1]} : vector<2x32xf32> to vector<2x8xf32>
    %82 = vector.extract_strided_slice %31 {offsets = [0, 24], sizes = [2, 8], strides = [1, 1]} : vector<2x32xf32> to vector<2x8xf32>
    %cst_28 = arith.constant dense<0.000000e+00> : vector<2x2xf32>
    %83 = tpu.matmul %80, %81, %cst_28 {dimension_numbers = #tpu.dot_dimension_numbers<[1], [1], [0], [0], [0, 0, 1, 0], [], []>} : vector<2x8xf32>, vector<2x8xf32>, vector<2x2xf32> -> vector<2x2xf32>
    %cst_29 = arith.constant 0.353553385 : f32
    %84 = vector.broadcast %cst_29 : f32 to vector<2x2xf32>
    %85 = arith.mulf %83, %84 : vector<2x2xf32>
    %cst_30 = arith.constant dense<0xFF800000> : vector<2xf32>
    %86 = vector.multi_reduction <maximumf>, %85, %cst_30 [1] : vector<2x2xf32> to vector<2xf32>
    %87 = vector.shape_cast %86 : vector<2xf32> to vector<2x1xf32>
    %88 = vector.broadcast %87 : vector<2x1xf32> to vector<2x2xf32>
    %89 = arith.subf %85, %88 : vector<2x2xf32>
    %90 = math.exp %89 : vector<2x2xf32>
    %cst_31 = arith.constant dense<0.000000e+00> : vector<2xf32>
    %91 = vector.multi_reduction <add>, %90, %cst_31 [1] : vector<2x2xf32> to vector<2xf32>
    %92 = vector.shape_cast %91 : vector<2xf32> to vector<2x1xf32>
    %93 = vector.broadcast %92 : vector<2x1xf32> to vector<2x2xf32>
    %94 = arith.divf %90, %93 : vector<2x2xf32>
    %cst_32 = arith.constant dense<0.000000e+00> : vector<2x8xf32>
    %95 = tpu.matmul %94, %82, %cst_32 {dimension_numbers = #tpu.dot_dimension_numbers<[1], [0], [0], [1], [0, 0, 1, 1], [], []>} : vector<2x2xf32>, vector<2x8xf32>, vector<2x8xf32> -> vector<2x8xf32>
    %96 = tpu.concatenate %47, %63, %79, %95 in 1 : vector<2x8xf32>, vector<2x8xf32>, vector<2x8xf32>, vector<2x8xf32> -> vector<2x32xf32>
    %c0_33 = arith.constant 0 : index
    %c0_34 = arith.constant 0 : index
    %c0_35 = arith.constant 0 : index
    %97 = vector.load %arg8[%c0_33, %c0_34, %c0_35] : memref<1x32x32xf32, #tpu.memory_space<vmem>>, vector<1x32x32xf32>
    %98 = vector.shape_cast %97 : vector<1x32x32xf32> to vector<32x32xf32>
    %cst_36 = arith.constant dense<0.000000e+00> : vector<2x32xf32>
    %99 = tpu.matmul %96, %98, %cst_36 {dimension_numbers = #tpu.dot_dimension_numbers<[1], [0], [0], [1], [0, 0, 1, 1], [], []>} : vector<2x32xf32>, vector<32x32xf32>, vector<2x32xf32> -> vector<2x32xf32>
    %100 = arith.addf %5, %99 : vector<2x32xf32>
    %c0_37 = arith.constant 0 : index
    %c0_38 = arith.constant 0 : index
    %c0_39 = arith.constant 0 : index
    %101 = vector.load %arg9[%c0_37, %c0_38, %c0_39] : memref<1x1x32xf32, #tpu.memory_space<vmem>>, vector<1x1x32xf32>
    %102 = vector.shape_cast %101 : vector<1x1x32xf32> to vector<1x32xf32>
    %103 = vector.broadcast %102 : vector<1x32xf32> to vector<2x32xf32>
    %104 = arith.addf %100, %103 : vector<2x32xf32>
    %cst_40 = arith.constant dense<0.000000e+00> : vector<2xf32>
    %105 = vector.multi_reduction <add>, %104, %cst_40 [1] : vector<2x32xf32> to vector<2xf32>
    %106 = vector.shape_cast %105 : vector<2xf32> to vector<2x1xf32>
    %cst_41 = arith.constant 3.200000e+01 : f32
    %107 = vector.broadcast %cst_41 : f32 to vector<2x1xf32>
    %108 = arith.divf %106, %107 : vector<2x1xf32>
    %109 = vector.broadcast %108 : vector<2x1xf32> to vector<2x32xf32>
    %110 = arith.subf %104, %109 : vector<2x32xf32>
    %111 = arith.mulf %110, %110 : vector<2x32xf32>
    %cst_42 = arith.constant dense<0.000000e+00> : vector<2xf32>
    %112 = vector.multi_reduction <add>, %111, %cst_42 [1] : vector<2x32xf32> to vector<2xf32>
    %113 = vector.shape_cast %112 : vector<2xf32> to vector<2x1xf32>
    %cst_43 = arith.constant 3.200000e+01 : f32
    %114 = vector.broadcast %cst_43 : f32 to vector<2x1xf32>
    %115 = arith.divf %113, %114 : vector<2x1xf32>
    %cst_44 = arith.constant 9.99999974E-6 : f32
    %116 = vector.broadcast %cst_44 : f32 to vector<2x1xf32>
    %117 = arith.addf %115, %116 : vector<2x1xf32>
    %118 = math.rsqrt %117 : vector<2x1xf32>
    %119 = vector.broadcast %118 : vector<2x1xf32> to vector<2x32xf32>
    %120 = arith.mulf %110, %119 : vector<2x32xf32>
    %c0_45 = arith.constant 0 : index
    %c0_46 = arith.constant 0 : index
    %c0_47 = arith.constant 0 : index
    %121 = vector.load %arg10[%c0_45, %c0_46, %c0_47] : memref<1x32x32xf32, #tpu.memory_space<vmem>>, vector<1x32x32xf32>
    %122 = vector.shape_cast %121 : vector<1x32x32xf32> to vector<32x32xf32>
    %cst_48 = arith.constant dense<0.000000e+00> : vector<2x32xf32>
    %123 = tpu.matmul %120, %122, %cst_48 {dimension_numbers = #tpu.dot_dimension_numbers<[1], [0], [0], [1], [0, 0, 1, 1], [], []>} : vector<2x32xf32>, vector<32x32xf32>, vector<2x32xf32> -> vector<2x32xf32>
    %124 = arith.negf %123 : vector<2x32xf32>
    %125 = math.exp %124 : vector<2x32xf32>
    %cst_49 = arith.constant 1.000000e+00 : f32
    %126 = vector.broadcast %cst_49 : f32 to vector<2x32xf32>
    %127 = arith.addf %126, %125 : vector<2x32xf32>
    %128 = arith.divf %126, %127 : vector<2x32xf32>
    %129 = arith.mulf %123, %128 : vector<2x32xf32>
    %c0_50 = arith.constant 0 : index
    %c0_51 = arith.constant 0 : index
    %c0_52 = arith.constant 0 : index
    %130 = vector.load %arg11[%c0_50, %c0_51, %c0_52] : memref<1x32x32xf32, #tpu.memory_space<vmem>>, vector<1x32x32xf32>
    %131 = vector.shape_cast %130 : vector<1x32x32xf32> to vector<32x32xf32>
    %cst_53 = arith.constant dense<0.000000e+00> : vector<2x32xf32>
    %132 = tpu.matmul %129, %131, %cst_53 {dimension_numbers = #tpu.dot_dimension_numbers<[1], [0], [0], [1], [0, 0, 1, 1], [], []>} : vector<2x32xf32>, vector<32x32xf32>, vector<2x32xf32> -> vector<2x32xf32>
    %133 = arith.mulf %129, %132 : vector<2x32xf32>
    %c0_54 = arith.constant 0 : index
    %c0_55 = arith.constant 0 : index
    %c0_56 = arith.constant 0 : index
    %134 = vector.load %arg12[%c0_54, %c0_55, %c0_56] : memref<1x32x32xf32, #tpu.memory_space<vmem>>, vector<1x32x32xf32>
    %135 = vector.shape_cast %134 : vector<1x32x32xf32> to vector<32x32xf32>
    %cst_57 = arith.constant dense<0.000000e+00> : vector<2x32xf32>
    %136 = tpu.matmul %133, %135, %cst_57 {dimension_numbers = #tpu.dot_dimension_numbers<[1], [0], [0], [1], [0, 0, 1, 1], [], []>} : vector<2x32xf32>, vector<32x32xf32>, vector<2x32xf32> -> vector<2x32xf32>
    %137 = arith.addf %104, %136 : vector<2x32xf32>
    %138 = arith.index_cast %arg1 : i32 to index
    %c0_58 = arith.constant 0 : index
    %c0_59 = arith.constant 0 : index
    %139 = vector.load %arg14[%138, %c0_58, %c0_59] : memref<4x2x32xf32, #tpu.memory_space<vmem>>, vector<1x2x32xf32>
    %140 = vector.shape_cast %139 : vector<1x2x32xf32> to vector<2x32xf32>
    %141 = vector.shape_cast %137 : vector<2x32xf32> to vector<1x2x32xf32>
    tpu.vector_store %arg14[%138, %c0_58, %c0_59], %141 {strides = array<i32>} : memref<4x2x32xf32, #tpu.memory_space<vmem>>, vector<1x2x32xf32>,
    %c1_i32 = arith.constant 1 : i32
    %142 = arith.cmpi eq, %arg0, %c1_i32 : i32
    %143 = arith.extui %142 : i1 to i32
    %c0_i32_60 = arith.constant 0 : i32
    %144 = arith.cmpi ne, %143, %c0_i32_60 : i32
    scf.if %144 {
      %c0_61 = arith.constant 0 : index
      %c0_62 = arith.constant 0 : index
      %c0_63 = arith.constant 0 : index
      %145 = vector.load %arg5[%c0_61, %c0_62, %c0_63] : memref<1x32x16xf32, #tpu.memory_space<vmem>>, vector<1x32x16xf32>
      %146 = vector.shape_cast %145 : vector<1x32x16xf32> to vector<32x16xf32>
      %cst_64 = arith.constant dense<0.000000e+00> : vector<2x16xf32>
      %147 = tpu.matmul %137, %146, %cst_64 {dimension_numbers = #tpu.dot_dimension_numbers<[1], [0], [0], [1], [0, 0, 1, 1], [], []>} : vector<2x32xf32>, vector<32x16xf32>, vector<2x16xf32> -> vector<2x16xf32>
      %c0_i32_65 = arith.constant 0 : i32
      %148 = arith.cmpi eq, %arg1, %c0_i32_65 : i32
      %149 = arith.extui %148 : i1 to i32
      %c0_i32_66 = arith.constant 0 : i32
      %150 = arith.cmpi ne, %149, %c0_i32_66 : i32
      scf.if %150 {
        %c0_69 = arith.constant 0 : index
        %c0_70 = arith.constant 0 : index
        %154 = vector.load %arg13[%c0_69, %c0_70] : memref<2x16xf32, #tpu.memory_space<vmem>>, vector<2x16xf32>
        tpu.vector_store %arg13[%c0_69, %c0_70], %147 {strides = array<i32>} : memref<2x16xf32, #tpu.memory_space<vmem>>, vector<2x16xf32>,
      } else {
      }
      %c0_i32_67 = arith.constant 0 : i32
      %151 = arith.cmpi ne, %arg1, %c0_i32_67 : i32
      %152 = arith.extui %151 : i1 to i32
      %c0_i32_68 = arith.constant 0 : i32
      %153 = arith.cmpi ne, %152, %c0_i32_68 : i32
      scf.if %153 {
        %c0_69 = arith.constant 0 : index
        %c0_70 = arith.constant 0 : index
        %154 = vector.load %arg13[%c0_69, %c0_70] : memref<2x16xf32, #tpu.memory_space<vmem>>, vector<2x16xf32>
        %155 = arith.addf %154, %147 : vector<2x16xf32>
        %c0_71 = arith.constant 0 : index
        %c0_72 = arith.constant 0 : index
        %156 = vector.load %arg13[%c0_71, %c0_72] : memref<2x16xf32, #tpu.memory_space<vmem>>, vector<2x16xf32>
        tpu.vector_store %arg13[%c0_71, %c0_72], %155 {strides = array<i32>} : memref<2x16xf32, #tpu.memory_space<vmem>>, vector<2x16xf32>,
      } else {
      }
    } else {
    }
    return
  }
  func.func @transform_0(%arg0: i32, %arg1: i32) -> (i32, i32, i32) {
    %c0_i32 = arith.constant 0 : i32
    %c0_i32_0 = arith.constant 0 : i32
    %c0_i32_1 = arith.constant 0 : i32
    return %arg1, %c0_i32, %c0_i32_0 : i32, i32, i32
  }
  func.func @transform_1(%arg0: i32, %arg1: i32) -> (i32, i32) {
    %c0_i32 = arith.constant 0 : i32
    %c0_i32_0 = arith.constant 0 : i32
    %c0_i32_1 = arith.constant 0 : i32
    return %c0_i32, %c0_i32_0 : i32, i32
  }
  func.func @transform_2(%arg0: i32, %arg1: i32) -> (i32, i32, i32) {
    %c0_i32 = arith.constant 0 : i32
    %c0_i32_0 = arith.constant 0 : i32
    %c0_i32_1 = arith.constant 0 : i32
    return %arg1, %c0_i32, %c0_i32_0 : i32, i32, i32
  }
  func.func @transform_3(%arg0: i32, %arg1: i32) -> (i32, i32, i32) {
    %c0_i32 = arith.constant 0 : i32
    %c0_i32_0 = arith.constant 0 : i32
    %c0_i32_1 = arith.constant 0 : i32
    return %arg1, %c0_i32, %c0_i32_0 : i32, i32, i32
  }
  func.func @transform_4(%arg0: i32, %arg1: i32) -> (i32, i32, i32) {
    %c0_i32 = arith.constant 0 : i32
    %c0_i32_0 = arith.constant 0 : i32
    %c0_i32_1 = arith.constant 0 : i32
    return %arg0, %c0_i32, %c0_i32_0 : i32, i32, i32
  }
  func.func @transform_5(%arg0: i32, %arg1: i32) -> (i32, i32, i32) {
    %c0_i32 = arith.constant 0 : i32
    %c0_i32_0 = arith.constant 0 : i32
    %c0_i32_1 = arith.constant 0 : i32
    return %arg0, %c0_i32, %c0_i32_0 : i32, i32, i32
  }
  func.func @transform_6(%arg0: i32, %arg1: i32) -> (i32, i32, i32) {
    %c0_i32 = arith.constant 0 : i32
    %c0_i32_0 = arith.constant 0 : i32
    %c0_i32_1 = arith.constant 0 : i32
    return %arg0, %c0_i32, %c0_i32_0 : i32, i32, i32
  }
  func.func @transform_7(%arg0: i32, %arg1: i32) -> (i32, i32, i32) {
    %c0_i32 = arith.constant 0 : i32
    %c0_i32_0 = arith.constant 0 : i32
    %c0_i32_1 = arith.constant 0 : i32
    return %arg0, %c0_i32, %c0_i32_0 : i32, i32, i32
  }
  func.func @transform_8(%arg0: i32, %arg1: i32) -> (i32, i32, i32) {
    %c0_i32 = arith.constant 0 : i32
    %c0_i32_0 = arith.constant 0 : i32
    %c0_i32_1 = arith.constant 0 : i32
    return %arg0, %c0_i32, %c0_i32_0 : i32, i32, i32
  }
  func.func @transform_9(%arg0: i32, %arg1: i32) -> (i32, i32, i32) {
    %c0_i32 = arith.constant 0 : i32
    %c0_i32_0 = arith.constant 0 : i32
    %c0_i32_1 = arith.constant 0 : i32
    return %arg0, %c0_i32, %c0_i32_0 : i32, i32, i32
  }
  func.func @transform_10(%arg0: i32, %arg1: i32) -> (i32, i32, i32) {
    %c0_i32 = arith.constant 0 : i32
    %c0_i32_0 = arith.constant 0 : i32
    %c0_i32_1 = arith.constant 0 : i32
    return %arg0, %c0_i32, %c0_i32_0 : i32, i32, i32
  }
  func.func @transform_11(%arg0: i32, %arg1: i32) -> (i32, i32) {
    %c0_i32 = arith.constant 0 : i32
    %c0_i32_0 = arith.constant 0 : i32
    %c0_i32_1 = arith.constant 0 : i32
    return %c0_i32, %c0_i32_0 : i32, i32
  }
}

</mosaic_0001>

<llo_original>
// kernel: tpu_custom_call.1
$region0: #{tpu_custom_call.1}
  #allocation0 [shape = 'u32[]', space=smem, size = 0x4, offset = 0x4, fixed_abs, tag = 'smem constant byte address 0x4 - core index']
  #allocation1 [shape = 'u32[144,128]{1,0:T(1,128)}', space=vmem, size = 0x12000, scoped, tag = 'internal scratch']
  #allocation2 [shape = 'f32[4,2,32]{2,1,0:T(2,128)}', space=vmem, size = 0x1000, scoped, tag = 'scratch operand']
  %s0 = inlined_call_operand.hbm [shape: f32[4,2,32], index: 0, kind: input, shape index: {}]
  %s1 = inlined_call_operand.hbm [shape: f32[32,32], index: 1, kind: input, shape index: {}]
  %s2 = inlined_call_operand.vmem [shape: f32[4,1,32], index: 2, kind: input, shape index: {}]
  %s3 = inlined_call_operand.vmem [shape: f32[4,32,16], index: 3, kind: input, shape index: {}]
  %s4 = inlined_call_operand.vmem [shape: f32[2,32,96], index: 4, kind: input, shape index: {}]
  %s5 = inlined_call_operand.vmem [shape: f32[2,1,96], index: 5, kind: input, shape index: {}]
  %s6 = inlined_call_operand.vmem [shape: f32[2,32,32], index: 6, kind: input, shape index: {}]
  %s7 = inlined_call_operand.vmem [shape: f32[2,1,32], index: 7, kind: input, shape index: {}]
  %s8 = inlined_call_operand.vmem [shape: f32[2,32,32], index: 8, kind: input, shape index: {}]
  %s9 = inlined_call_operand.hbm [shape: f32[2,32,32], index: 9, kind: input, shape index: {}]
  %s10 = inlined_call_operand.hbm [shape: f32[2,32,32], index: 10, kind: input, shape index: {}]
  %s11 = inlined_call_operand.hbm [shape: f32[2,16], index: 11, kind: output, shape index: {}]
  %s12 = sld [smem:[#allocation0]]
  $region109: #{tpu_custom_call.1} parent=0
    _
  %s14 = ssub.s32 1, %s12
  %s15 = scalar_select 0, %s14, %s12
  $region1: #{tpu_custom_call.1} parent=0
    #allocation3 [shape = 'u8[2048]{0}', space=vmem, size = 0x800, scoped, tag = 'input window, operand 0']
    #allocation4 [shape = 's32[2]{0}', space=sflag, size = 0x8, scoped, tag = 'scoped memory for tpu_custom_call.1']
    #allocation5 [shape = 's32[2]{0}', space=sflag, size = 0x8, scoped, tag = 'scoped memory for tpu_custom_call.1']
    #allocation6 [shape = 'u8[16384]{0}', space=vmem, size = 0x4000, scoped, tag = 'input window, operand 1, single buffered']
    #allocation7 [shape = 's32[1]{0}', space=sflag, size = 0x4, scoped, tag = 'scoped memory for tpu_custom_call.1']
    #allocation8 [shape = 'u8[32768]{0}', space=vmem, size = 0x8000, scoped, tag = 'input window, operand 9']
    #allocation9 [shape = 'u8[32768]{0}', space=vmem, size = 0x8000, scoped, tag = 'input window, operand 10']
    #allocation10 [shape = 'u8[1024]{0}', space=vmem, size = 0x400, scoped, tag = 'output window, operand 0, single buffered']
    %16 = vsyncpa [#allocation4], 0
    %s17 = scalar_lea.sflag [#allocation4], 1
    %18 = vsyncpa %s17, 0
    %19 = vsyncpa [#allocation7], 0
    %20 = vsyncpa [#allocation5], 0
    loop: start=0, step=1, limit=10
    $region2: #{tpu_custom_call.1} parent=1 // loop_pre_header
      _
    $region3: #{tpu_custom_call.1} parent=1 // loop_header
      %s22 = sphi 0, %s26
      %p23 = scmp.ge.s32.totalorder %s22, 10
      %s29 = sphi 0, %s41
      %s30 = sphi 0, %s37
      %s31 = sphi 0, %s29
      %s32 = sphi 0, %s30
      %s33 = sphi 0, %s31
      %s34 = sphi 0, %s32
      %s44 = sphi 0, %s46
      %s47 = sphi 0, %s44
      %s48 = sphi 0, %s47
      %s64 = sphi 0, %s48
      %s68 = sphi 0, %s68
      %s70 = sphi 0, %s68
      %s71 = sphi 0, %s70
      %s85 = sphi 0, %s71
      %s91 = sphi 0, %s93
      %s94 = sphi 0, %s91
      %s95 = sphi 0, %s94
      %s111 = sphi 0, %s95
      %s117 = sphi 0, %s119
      %s120 = sphi 0, %s117
      %s121 = sphi 0, %s120
      %s137 = sphi 0, %s121
      %s143 = sphi 0, %s145
      %s146 = sphi 0, %s143
      %s147 = sphi 0, %s146
      %s163 = sphi 0, %s147
      %s169 = sphi 0, %s171
      %s172 = sphi 0, %s169
      %s173 = sphi 0, %s172
      %s189 = sphi 0, %s173
      %s195 = sphi 0, %s197
      %s198 = sphi 0, %s195
      %s199 = sphi 0, %s198
      %s215 = sphi 0, %s199
      %s221 = sphi 0, %s223
      %s224 = sphi 0, %s221
      %s225 = sphi 0, %s224
      %s241 = sphi 0, %s225
      %s247 = sphi 0, %s249
      %s250 = sphi 0, %s247
      %s251 = sphi 0, %s250
      %s267 = sphi 0, %s251
      %s273 = sphi 0, %s275
      %s276 = sphi 0, %s273
      %s277 = sphi 0, %s276
      %s293 = sphi 0, %s277
      %s299 = sphi 0, %s301
      %s302 = sphi 0, %s299
      %s303 = sphi 0, %s302
      %s319 = sphi 0, %s303
      %s323 = sphi 0, %s323
      %s325 = sphi 0, %s323
      %s326 = sphi 0, %s325
      %s340 = sphi 0, %s326
    $region4: #{tpu_custom_call.1} parent=1 // loop_header_branch
      %25 = sbr.rel (%p23) target = $region8
    $region5: #{tpu_custom_call.1} parent=1 // loop_body
      %s27 = ssub.s32 %s22, 1
      %s28 = ssub.s32 %s22, 2
      %s35 = sadd.s32 1, %s30
      %p36 = scmp.ge.s32.totalorder %s35, 4
      %s37 = scalar_select %p36, 0, %s35
      %s38 = sadd.s32 1, %s29
      %s39 = scalar_select %p36, %s38, %s29
      %p40 = scmp.ge.s32.totalorder %s39, 2
      %s41 = scalar_select %p40, 0, %s39
      %s42 = ssub.s32 %s30, %s37
      %p43 = scmp.eq.s32.totalorder %s42, 0
      %s45 = sadd.s32 %s44, 1
      %s46 = scalar_select %p43, %s44, %s45
      %p49 = pneg %p43
      %p50 = scmp.eq.s32.totalorder %s22, 7
      %p51 = por %p49, %p50
      %p52 = scmp.ne.s32.totalorder %s44, %s47
      %p53 = scmp.eq.s32.totalorder %s22, 0
      %p54 = por %p52, %p53
      %p55 = scmp.ne.s32.totalorder %s44, %s47
      %p56 = scmp.eq.s32.totalorder %s27, 7
      %p57 = por %p55, %p56
      %p58 = scmp.ne.s32.totalorder %s47, %s48
      %p59 = scmp.eq.s32.totalorder %s27, 0
      %p60 = por %p58, %p59
      %p61 = scmp.ne.s32.totalorder %s47, %s48
      %p62 = scmp.eq.s32.totalorder %s28, 7
      %p63 = por %p61, %p62
      %p65 = scmp.ne.s32.totalorder %s48, %s64
      %p66 = scmp.eq.s32.totalorder %s28, 0
      %p67 = por %p65, %p66
      %s69 = sadd.s32 %s68, 1
      %p72 = scmp.eq.s32.totalorder %s22, 7
      %p73 = scmp.ne.s32.totalorder %s68, %s70
      %p74 = scmp.eq.s32.totalorder %s22, 0
      %p75 = por %p73, %p74
      %p76 = scmp.ne.s32.totalorder %s68, %s70
      %p77 = scmp.eq.s32.totalorder %s27, 7
      %p78 = por %p76, %p77
      %p79 = scmp.ne.s32.totalorder %s70, %s71
      %p80 = scmp.eq.s32.totalorder %s27, 0
      %p81 = por %p79, %p80
      %p82 = scmp.ne.s32.totalorder %s70, %s71
      %p83 = scmp.eq.s32.totalorder %s28, 7
      %p84 = por %p82, %p83
      %p86 = scmp.ne.s32.totalorder %s71, %s85
      %p87 = scmp.eq.s32.totalorder %s28, 0
      %p88 = por %p86, %p87
      %s89 = ssub.s32 %s30, %s37
      %p90 = scmp.eq.s32.totalorder %s89, 0
      %s92 = sadd.s32 %s91, 1
      %s93 = scalar_select %p90, %s91, %s92
      %p96 = pneg %p90
      %p97 = scmp.eq.s32.totalorder %s22, 7
      %p98 = por %p96, %p97
      %p99 = scmp.ne.s32.totalorder %s91, %s94
      %p100 = scmp.eq.s32.totalorder %s22, 0
      %p101 = por %p99, %p100
      %p102 = scmp.ne.s32.totalorder %s91, %s94
      %p103 = scmp.eq.s32.totalorder %s27, 7
      %p104 = por %p102, %p103
      %p105 = scmp.ne.s32.totalorder %s94, %s95
      %p106 = scmp.eq.s32.totalorder %s27, 0
      %p107 = por %p105, %p106
      %p108 = scmp.ne.s32.totalorder %s94, %s95
      %p109 = scmp.eq.s32.totalorder %s28, 7
      %p110 = por %p108, %p109
      %p112 = scmp.ne.s32.totalorder %s95, %s111
      %p113 = scmp.eq.s32.totalorder %s28, 0
      %p114 = por %p112, %p113
      %s115 = ssub.s32 %s30, %s37
      %p116 = scmp.eq.s32.totalorder %s115, 0
      %s118 = sadd.s32 %s117, 1
      %s119 = scalar_select %p116, %s117, %s118
      %p122 = pneg %p116
      %p123 = scmp.eq.s32.totalorder %s22, 7
      %p124 = por %p122, %p123
      %p125 = scmp.ne.s32.totalorder %s117, %s120
      %p126 = scmp.eq.s32.totalorder %s22, 0
      %p127 = por %p125, %p126
      %p128 = scmp.ne.s32.totalorder %s117, %s120
      %p129 = scmp.eq.s32.totalorder %s27, 7
      %p130 = por %p128, %p129
      %p131 = scmp.ne.s32.totalorder %s120, %s121
      %p132 = scmp.eq.s32.totalorder %s27, 0
      %p133 = por %p131, %p132
      %p134 = scmp.ne.s32.totalorder %s120, %s121
      %p135 = scmp.eq.s32.totalorder %s28, 7
      %p136 = por %p134, %p135
      %p138 = scmp.ne.s32.totalorder %s121, %s137
      %p139 = scmp.eq.s32.totalorder %s28, 0
      %p140 = por %p138, %p139
      %s141 = ssub.s32 %s29, %s41
      %p142 = scmp.eq.s32.totalorder %s141, 0
      %s144 = sadd.s32 %s143, 1
      %s145 = scalar_select %p142, %s143, %s144
      %p148 = pneg %p142
      %p149 = scmp.eq.s32.totalorder %s22, 7
      %p150 = por %p148, %p149
      %p151 = scmp.ne.s32.totalorder %s143, %s146
      %p152 = scmp.eq.s32.totalorder %s22, 0
      %p153 = por %p151, %p152
      %p154 = scmp.ne.s32.totalorder %s143, %s146
      %p155 = scmp.eq.s32.totalorder %s27, 7
      %p156 = por %p154, %p155
      %p157 = scmp.ne.s32.totalorder %s146, %s147
      %p158 = scmp.eq.s32.totalorder %s27, 0
      %p159 = por %p157, %p158
      %p160 = scmp.ne.s32.totalorder %s146, %s147
      %p161 = scmp.eq.s32.totalorder %s28, 7
      %p162 = por %p160, %p161
      %p164 = scmp.ne.s32.totalorder %s147, %s163
      %p165 = scmp.eq.s32.totalorder %s28, 0
      %p166 = por %p164, %p165
      %s167 = ssub.s32 %s29, %s41
      %p168 = scmp.eq.s32.totalorder %s167, 0
      %s170 = sadd.s32 %s169, 1
      %s171 = scalar_select %p168, %s169, %s170
      %p174 = pneg %p168
      %p175 = scmp.eq.s32.totalorder %s22, 7
      %p176 = por %p174, %p175
      %p177 = scmp.ne.s32.totalorder %s169, %s172
      %p178 = scmp.eq.s32.totalorder %s22, 0
      %p179 = por %p177, %p178
      %p180 = scmp.ne.s32.totalorder %s169, %s172
      %p181 = scmp.eq.s32.totalorder %s27, 7
      %p182 = por %p180, %p181
      %p183 = scmp.ne.s32.totalorder %s172, %s173
      %p184 = scmp.eq.s32.totalorder %s27, 0
      %p185 = por %p183, %p184
      %p186 = scmp.ne.s32.totalorder %s172, %s173
      %p187 = scmp.eq.s32.totalorder %s28, 7
      %p188 = por %p186, %p187
      %p190 = scmp.ne.s32.totalorder %s173, %s189
      %p191 = scmp.eq.s32.totalorder %s28, 0
      %p192 = por %p190, %p191
      %s193 = ssub.s32 %s29, %s41
      %p194 = scmp.eq.s32.totalorder %s193, 0
      %s196 = sadd.s32 %s195, 1
      %s197 = scalar_select %p194, %s195, %s196
      %p200 = pneg %p194
      %p201 = scmp.eq.s32.totalorder %s22, 7
      %p202 = por %p200, %p201
      %p203 = scmp.ne.s32.totalorder %s195, %s198
      %p204 = scmp.eq.s32.totalorder %s22, 0
      %p205 = por %p203, %p204
      %p206 = scmp.ne.s32.totalorder %s195, %s198
      %p207 = scmp.eq.s32.totalorder %s27, 7
      %p208 = por %p206, %p207
      %p209 = scmp.ne.s32.totalorder %s198, %s199
      %p210 = scmp.eq.s32.totalorder %s27, 0
      %p211 = por %p209, %p210
      %p212 = scmp.ne.s32.totalorder %s198, %s199
      %p213 = scmp.eq.s32.totalorder %s28, 7
      %p214 = por %p212, %p213
      %p216 = scmp.ne.s32.totalorder %s199, %s215
      %p217 = scmp.eq.s32.totalorder %s28, 0
      %p218 = por %p216, %p217
      %s219 = ssub.s32 %s29, %s41
      %p220 = scmp.eq.s32.totalorder %s219, 0
      %s222 = sadd.s32 %s221, 1
      %s223 = scalar_select %p220, %s221, %s222
      %p226 = pneg %p220
      %p227 = scmp.eq.s32.totalorder %s22, 7
      %p228 = por %p226, %p227
      %p229 = scmp.ne.s32.totalorder %s221, %s224
      %p230 = scmp.eq.s32.totalorder %s22, 0
      %p231 = por %p229, %p230
      %p232 = scmp.ne.s32.totalorder %s221, %s224
      %p233 = scmp.eq.s32.totalorder %s27, 7
      %p234 = por %p232, %p233
      %p235 = scmp.ne.s32.totalorder %s224, %s225
      %p236 = scmp.eq.s32.totalorder %s27, 0
      %p237 = por %p235, %p236
      %p238 = scmp.ne.s32.totalorder %s224, %s225
      %p239 = scmp.eq.s32.totalorder %s28, 7
      %p240 = por %p238, %p239
      %p242 = scmp.ne.s32.totalorder %s225, %s241
      %p243 = scmp.eq.s32.totalorder %s28, 0
      %p244 = por %p242, %p243
      %s245 = ssub.s32 %s29, %s41
      %p246 = scmp.eq.s32.totalorder %s245, 0
      %s248 = sadd.s32 %s247, 1
      %s249 = scalar_select %p246, %s247, %s248
      %p252 = pneg %p246
      %p253 = scmp.eq.s32.totalorder %s22, 7
      %p254 = por %p252, %p253
      %p255 = scmp.ne.s32.totalorder %s247, %s250
      %p256 = scmp.eq.s32.totalorder %s22, 0
      %p257 = por %p255, %p256
      %p258 = scmp.ne.s32.totalorder %s247, %s250
      %p259 = scmp.eq.s32.totalorder %s27, 7
      %p260 = por %p258, %p259
      %p261 = scmp.ne.s32.totalorder %s250, %s251
      %p262 = scmp.eq.s32.totalorder %s27, 0
      %p263 = por %p261, %p262
      %p264 = scmp.ne.s32.totalorder %s250, %s251
      %p265 = scmp.eq.s32.totalorder %s28, 7
      %p266 = por %p264, %p265
      %p268 = scmp.ne.s32.totalorder %s251, %s267
      %p269 = scmp.eq.s32.totalorder %s28, 0
      %p270 = por %p268, %p269
      %s271 = ssub.s32 %s29, %s41
      %p272 = scmp.eq.s32.totalorder %s271, 0
      %s274 = sadd.s32 %s273, 1
      %s275 = scalar_select %p272, %s273, %s274
      %p278 = pneg %p272
      %p279 = scmp.eq.s32.totalorder %s22, 7
      %p280 = por %p278, %p279
      %p281 = scmp.ne.s32.totalorder %s273, %s276
      %p282 = scmp.eq.s32.totalorder %s22, 0
      %p283 = por %p281, %p282
      %p284 = scmp.ne.s32.totalorder %s273, %s276
      %p285 = scmp.eq.s32.totalorder %s27, 7
      %p286 = por %p284, %p285
      %p287 = scmp.ne.s32.totalorder %s276, %s277
      %p288 = scmp.eq.s32.totalorder %s27, 0
      %p289 = por %p287, %p288
      %p290 = scmp.ne.s32.totalorder %s276, %s277
      %p291 = scmp.eq.s32.totalorder %s28, 7
      %p292 = por %p290, %p291
      %p294 = scmp.ne.s32.totalorder %s277, %s293
      %p295 = scmp.eq.s32.totalorder %s28, 0
      %p296 = por %p294, %p295
      %s297 = ssub.s32 %s29, %s41
      %p298 = scmp.eq.s32.totalorder %s297, 0
      %s300 = sadd.s32 %s299, 1
      %s301 = scalar_select %p298, %s299, %s300
      %p304 = pneg %p298
      %p305 = scmp.eq.s32.totalorder %s22, 7
      %p306 = por %p304, %p305
      %p307 = scmp.ne.s32.totalorder %s299, %s302
      %p308 = scmp.eq.s32.totalorder %s22, 0
      %p309 = por %p307, %p308
      %p310 = scmp.ne.s32.totalorder %s299, %s302
      %p311 = scmp.eq.s32.totalorder %s27, 7
      %p312 = por %p310, %p311
      %p313 = scmp.ne.s32.totalorder %s302, %s303
      %p314 = scmp.eq.s32.totalorder %s27, 0
      %p315 = por %p313, %p314
      %p316 = scmp.ne.s32.totalorder %s302, %s303
      %p317 = scmp.eq.s32.totalorder %s28, 7
      %p318 = por %p316, %p317
      %p320 = scmp.ne.s32.totalorder %s303, %s319
      %p321 = scmp.eq.s32.totalorder %s28, 0
      %p322 = por %p320, %p321
      %s324 = sadd.s32 %s323, 1
      %p327 = scmp.eq.s32.totalorder %s22, 7
      %p328 = scmp.ne.s32.totalorder %s323, %s325
      %p329 = scmp.eq.s32.totalorder %s22, 0
      %p330 = por %p328, %p329
      %p331 = scmp.ne.s32.totalorder %s323, %s325
      %p332 = scmp.eq.s32.totalorder %s27, 7
      %p333 = por %p331, %p332
      %p334 = scmp.ne.s32.totalorder %s325, %s326
      %p335 = scmp.eq.s32.totalorder %s27, 0
      %p336 = por %p334, %p335
      %p337 = scmp.ne.s32.totalorder %s325, %s326
      %p338 = scmp.eq.s32.totalorder %s28, 7
      %p339 = por %p337, %p338
      %p341 = scmp.ne.s32.totalorder %s326, %s340
      %p342 = scmp.eq.s32.totalorder %s28, 0
      %p343 = por %p341, %p342
      %p344 = scmp.le.s32.totalorder 1, %s22
      %p345 = scmp.lt.s32.totalorder %s22, 9
      %p346 = pnand %p344, %p345
      %p347 = pneg %p346
      // Predicated region
      $region9: #{tpu_custom_call.1} parent=5 // pred_check
        _
      $region10: #{tpu_custom_call.1} parent=5 // pred_check_branch
        %349 = sbr.rel (%p346) target = $region12
      $region11: #{tpu_custom_call.1} parent=5 // pred_region
        %s350 = ssub.s32 %s22, 1
        // Predicated region
        $region13: #{tpu_custom_call.1} parent=11 // pred_check
          %p351 = pneg %p81
        $region14: #{tpu_custom_call.1} parent=11 // pred_check_branch
          %353 = sbr.rel (%p351) target = $region16
        $region15: #{tpu_custom_call.1} parent=11 // pred_region
          %s355 = ssub.s32 512, 512
          %356 = vsyncadd [#allocation7], %s355
          %s357 = sshll.u32 [#allocation6], 4
          %s358 = int_to_ptr.vmem [resolvable:$true] %s357
          %363 = dma.hbm_to_vmem [thread:$0]  %s1, 512, %s358, [#allocation7], 128, 128, 8
        $region16: #{tpu_custom_call.1} parent=11 // pred_fallthru
          _
      $region12: #{tpu_custom_call.1} parent=5 // pred_fallthru
        _
      %p364 = scmp.lt.s32.totalorder %s22, 8
      // Predicated region
      $region17: #{tpu_custom_call.1} parent=5 // pred_check
        %p365 = pneg %p364
      $region18: #{tpu_custom_call.1} parent=5 // pred_check_branch
        %367 = sbr.rel (%p365) target = $region20
      $region19: #{tpu_custom_call.1} parent=5 // pred_region
        // Predicated region
        $region21: #{tpu_custom_call.1} parent=19 // pred_check
          %p368 = pneg %p54
        $region22: #{tpu_custom_call.1} parent=19 // pred_check_branch
          %370 = sbr.rel (%p368) target = $region24
        $region23: #{tpu_custom_call.1} parent=19 // pred_region
          %s371 = sand.u32 %s22, 1
          %s372 = scalar_lea.sflag [#allocation4], %s371
          %s373 = sand.u32 %s44, 1
          %s374 = smul.addr %s373, 2
          %s375 = scalar_lea.vmem [#allocation3], %s374
          %s377 = ssub.s32 32, 32
          %378 = vsyncadd %s372, %s377
          %s379 = smul.addr %s30, 32
          %s380 = scalar_lea.hbm %s0, %s379
          %s382 = sshll.u32 %s375, 4
          %s383 = int_to_ptr.vmem [resolvable:$true] %s382
          %385 = dma.hbm_to_vmem [thread:$0]  %s380, 32, %s383, %s372
        $region24: #{tpu_custom_call.1} parent=19 // pred_fallthru
          _
        // Predicated region
        $region25: #{tpu_custom_call.1} parent=19 // pred_check
          %p386 = pneg %p101
        $region26: #{tpu_custom_call.1} parent=19 // pred_check_branch
          %388 = sbr.rel (%p386) target = $region28
        $region27: #{tpu_custom_call.1} parent=19 // pred_region
          %p389 = scmp.lt.s32.totalorder %s30, 3
          %s390 = scalar_select %p389, %s30, 3
          %s391 = scalar_lea.vmem %s2, %s390
        $region28: #{tpu_custom_call.1} parent=19 // pred_fallthru
          _
        // Predicated region
        $region29: #{tpu_custom_call.1} parent=19 // pred_check
          %p392 = pneg %p127
        $region30: #{tpu_custom_call.1} parent=19 // pred_check_branch
          %394 = sbr.rel (%p392) target = $region32
        $region31: #{tpu_custom_call.1} parent=19 // pred_region
          %p395 = scmp.lt.s32.totalorder %s30, 3
          %s396 = scalar_select %p395, %s30, 3
          %s397 = smul.addr %s396, 4
          %s398 = smul.addr %s397, 8
          %s399 = scalar_lea.vmem %s3, %s398
        $region32: #{tpu_custom_call.1} parent=19 // pred_fallthru
          _
        // Predicated region
        $region33: #{tpu_custom_call.1} parent=19 // pred_check
          %p400 = pneg %p153
        $region34: #{tpu_custom_call.1} parent=19 // pred_check_branch
          %402 = sbr.rel (%p400) target = $region36
        $region35: #{tpu_custom_call.1} parent=19 // pred_region
          %p403 = scmp.lt.s32.totalorder %s29, 1
          %s404 = scalar_select %p403, %s29, 1
          %s405 = smul.addr %s404, 4
          %s406 = smul.addr %s405, 8
          %s407 = scalar_lea.vmem %s4, %s406
        $region36: #{tpu_custom_call.1} parent=19 // pred_fallthru
          _
        // Predicated region
        $region37: #{tpu_custom_call.1} parent=19 // pred_check
          %p408 = pneg %p179
        $region38: #{tpu_custom_call.1} parent=19 // pred_check_branch
          %410 = sbr.rel (%p408) target = $region40
        $region39: #{tpu_custom_call.1} parent=19 // pred_region
          %p411 = scmp.lt.s32.totalorder %s29, 1
          %s412 = scalar_select %p411, %s29, 1
          %s413 = scalar_lea.vmem %s5, %s412
        $region40: #{tpu_custom_call.1} parent=19 // pred_fallthru
          _
        // Predicated region
        $region41: #{tpu_custom_call.1} parent=19 // pred_check
          %p414 = pneg %p205
        $region42: #{tpu_custom_call.1} parent=19 // pred_check_branch
          %416 = sbr.rel (%p414) target = $region44
        $region43: #{tpu_custom_call.1} parent=19 // pred_region
          %p417 = scmp.lt.s32.totalorder %s29, 1
          %s418 = scalar_select %p417, %s29, 1
          %s419 = smul.addr %s418, 4
          %s420 = smul.addr %s419, 8
          %s421 = scalar_lea.vmem %s6, %s420
        $region44: #{tpu_custom_call.1} parent=19 // pred_fallthru
          _
        // Predicated region
        $region45: #{tpu_custom_call.1} parent=19 // pred_check
          %p422 = pneg %p231
        $region46: #{tpu_custom_call.1} parent=19 // pred_check_branch
          %424 = sbr.rel (%p422) target = $region48
        $region47: #{tpu_custom_call.1} parent=19 // pred_region
          %p425 = scmp.lt.s32.totalorder %s29, 1
          %s426 = scalar_select %p425, %s29, 1
          %s427 = scalar_lea.vmem %s7, %s426
        $region48: #{tpu_custom_call.1} parent=19 // pred_fallthru
          _
        // Predicated region
        $region49: #{tpu_custom_call.1} parent=19 // pred_check
          %p428 = pneg %p257
        $region50: #{tpu_custom_call.1} parent=19 // pred_check_branch
          %430 = sbr.rel (%p428) target = $region52
        $region51: #{tpu_custom_call.1} parent=19 // pred_region
          %p431 = scmp.lt.s32.totalorder %s29, 1
          %s432 = scalar_select %p431, %s29, 1
          %s433 = smul.addr %s432, 4
          %s434 = smul.addr %s433, 8
          %s435 = scalar_lea.vmem %s8, %s434
        $region52: #{tpu_custom_call.1} parent=19 // pred_fallthru
          _
        // Predicated region
        $region53: #{tpu_custom_call.1} parent=19 // pred_check
          %p436 = pneg %p283
        $region54: #{tpu_custom_call.1} parent=19 // pred_check_branch
          %438 = sbr.rel (%p436) target = $region56
        $region55: #{tpu_custom_call.1} parent=19 // pred_region
          %s439 = sand.u32 %s22, 1
          %s440 = scalar_lea.sflag [#allocation4], %s439
          %s441 = sand.u32 %s273, 1
          %s442 = smul.addr %s441, 32
          %s443 = scalar_lea.vmem [#allocation8], %s442
          %s445 = ssub.s32 512, 512
          %446 = vsyncadd %s440, %s445
          %s447 = smul.addr %s29, 4
          %s448 = smul.addr %s447, 128
          %s449 = scalar_lea.hbm %s9, %s448
          %s450 = sshll.u32 %s443, 4
          %s451 = int_to_ptr.vmem [resolvable:$true] %s450
          %456 = dma.hbm_to_vmem [thread:$0]  %s449, 512, %s451, %s440, 128, 128, 8
        $region56: #{tpu_custom_call.1} parent=19 // pred_fallthru
          _
        // Predicated region
        $region57: #{tpu_custom_call.1} parent=19 // pred_check
          %p457 = pneg %p309
        $region58: #{tpu_custom_call.1} parent=19 // pred_check_branch
          %459 = sbr.rel (%p457) target = $region60
        $region59: #{tpu_custom_call.1} parent=19 // pred_region
          %s460 = sand.u32 %s22, 1
          %s461 = scalar_lea.sflag [#allocation4], %s460
          %s462 = sand.u32 %s299, 1
          %s463 = smul.addr %s462, 32
          %s464 = scalar_lea.vmem [#allocation9], %s463
          %s466 = ssub.s32 512, 512
          %467 = vsyncadd %s461, %s466
          %s468 = smul.addr %s29, 4
          %s469 = smul.addr %s468, 128
          %s470 = scalar_lea.hbm %s10, %s469
          %s471 = sshll.u32 %s464, 4
          %s472 = int_to_ptr.vmem [resolvable:$true] %s471
          %477 = dma.hbm_to_vmem [thread:$0]  %s470, 512, %s472, %s461, 128, 128, 8
        $region60: #{tpu_custom_call.1} parent=19 // pred_fallthru
          _
      $region20: #{tpu_custom_call.1} parent=5 // pred_fallthru
        _
      %p478 = scmp.le.s32.totalorder 1, %s22
      %p479 = scmp.lt.s32.totalorder %s22, 9
      %p480 = pnand %p478, %p479
      %p481 = pneg %p480
      // Predicated region
      $region61: #{tpu_custom_call.1} parent=5 // pred_check
        _
      $region62: #{tpu_custom_call.1} parent=5 // pred_check_branch
        %483 = sbr.rel (%p480) target = $region64
      $region63: #{tpu_custom_call.1} parent=5 // pred_region
        %s484 = ssub.s32 %s22, 1
        %s485 = sand.u32 %s27, 1
        %s486 = scalar_lea.sflag [#allocation4], %s485
        %s487 = sand.u32 %s47, 1
        %s488 = smul.addr %s487, 2
        %s489 = scalar_lea.vmem [#allocation3], %s488
        // Predicated region
        $region65: #{tpu_custom_call.1} parent=63 // pred_check
          %p490 = pneg %p60
        $region66: #{tpu_custom_call.1} parent=63 // pred_check_branch
          %492 = sbr.rel (%p490) target = $region68
        $region67: #{tpu_custom_call.1} parent=63 // pred_region
          %493 = dma.done %s486, 32
        $region68: #{tpu_custom_call.1} parent=63 // pred_fallthru
          _
        // Predicated region
        $region69: #{tpu_custom_call.1} parent=63 // pred_check
          %p494 = pneg %p81
        $region70: #{tpu_custom_call.1} parent=63 // pred_check_branch
          %496 = sbr.rel (%p494) target = $region72
        $region71: #{tpu_custom_call.1} parent=63 // pred_region
          %497 = dma.done [#allocation7], 512
        $region72: #{tpu_custom_call.1} parent=63 // pred_fallthru
          _
        %s498 = sand.u32 %s27, 1
        %s499 = scalar_lea.sflag [#allocation4], %s498
        %s500 = sand.u32 %s276, 1
        %s501 = smul.addr %s500, 32
        %s502 = scalar_lea.vmem [#allocation8], %s501
        // Predicated region
        $region73: #{tpu_custom_call.1} parent=63 // pred_check
          %p503 = pneg %p289
        $region74: #{tpu_custom_call.1} parent=63 // pred_check_branch
          %505 = sbr.rel (%p503) target = $region76
        $region75: #{tpu_custom_call.1} parent=63 // pred_region
          %506 = dma.done %s499, 512
        $region76: #{tpu_custom_call.1} parent=63 // pred_fallthru
          _
        %s507 = sand.u32 %s27, 1
        %s508 = scalar_lea.sflag [#allocation4], %s507
        %s509 = sand.u32 %s302, 1
        %s510 = smul.addr %s509, 32
        %s511 = scalar_lea.vmem [#allocation9], %s510
        // Predicated region
        $region77: #{tpu_custom_call.1} parent=63 // pred_check
          %p512 = pneg %p315
        $region78: #{tpu_custom_call.1} parent=63 // pred_check_branch
          %514 = sbr.rel (%p512) target = $region80
        $region79: #{tpu_custom_call.1} parent=63 // pred_region
          %515 = dma.done %s508, 512
        $region80: #{tpu_custom_call.1} parent=63 // pred_fallthru
          _
        %s516 = sand.u32 %s27, 1
        %s517 = scalar_lea.sflag [#allocation4], %s516
        %s518 = sand.u32 %s47, 1
        %s519 = smul.addr %s518, 2
        %s520 = scalar_lea.vmem [#allocation3], %s519
        %p521 = pneg %p60
        %p522 = pneg %p57
        %p523 = pneg %p81
        %p524 = pneg %p78
        %p525 = scmp.lt.s32.totalorder %s32, 3
        %s526 = scalar_select %p525, %s32, 3
        %s527 = scalar_lea.vmem %s2, %s526
        %p528 = pneg %p107
        %p529 = pneg %p104
        %p530 = scmp.lt.s32.totalorder %s32, 3
        %s531 = scalar_select %p530, %s32, 3
        %s532 = smul.addr %s531, 4
        %s533 = smul.addr %s532, 8
        %s534 = scalar_lea.vmem %s3, %s533
        %p535 = pneg %p133
        %p536 = pneg %p130
        %p537 = scmp.lt.s32.totalorder %s31, 1
        %s538 = scalar_select %p537, %s31, 1
        %s539 = smul.addr %s538, 4
        %s540 = smul.addr %s539, 8
        %s541 = scalar_lea.vmem %s4, %s540
        %p542 = pneg %p159
        %p543 = pneg %p156
        %p544 = scmp.lt.s32.totalorder %s31, 1
        %s545 = scalar_select %p544, %s31, 1
        %s546 = scalar_lea.vmem %s5, %s545
        %p547 = pneg %p185
        %p548 = pneg %p182
        %p549 = scmp.lt.s32.totalorder %s31, 1
        %s550 = scalar_select %p549, %s31, 1
        %s551 = smul.addr %s550, 4
        %s552 = smul.addr %s551, 8
        %s553 = scalar_lea.vmem %s6, %s552
        %p554 = pneg %p211
        %p555 = pneg %p208
        %p556 = scmp.lt.s32.totalorder %s31, 1
        %s557 = scalar_select %p556, %s31, 1
        %s558 = scalar_lea.vmem %s7, %s557
        %p559 = pneg %p237
        %p560 = pneg %p234
        %p561 = scmp.lt.s32.totalorder %s31, 1
        %s562 = scalar_select %p561, %s31, 1
        %s563 = smul.addr %s562, 4
        %s564 = smul.addr %s563, 8
        %s565 = scalar_lea.vmem %s8, %s564
        %p566 = pneg %p263
        %p567 = pneg %p260
        %s568 = sand.u32 %s27, 1
        %s569 = scalar_lea.sflag [#allocation4], %s568
        %s570 = sand.u32 %s276, 1
        %s571 = smul.addr %s570, 32
        %s572 = scalar_lea.vmem [#allocation8], %s571
        %p573 = pneg %p289
        %p574 = pneg %p286
        %s575 = sand.u32 %s27, 1
        %s576 = scalar_lea.sflag [#allocation4], %s575
        %s577 = sand.u32 %s302, 1
        %s578 = smul.addr %s577, 32
        %s579 = scalar_lea.vmem [#allocation9], %s578
        %p580 = pneg %p315
        %p581 = pneg %p312
        %p582 = pneg %p336
        %p583 = pneg %p333
        %p584 = scmp.lt.s32.totalorder %s32, 3
        %s585 = scalar_select %p584, %s32, 3
        %s586 = scalar_lea.vmem %s2, %s585
        %p587 = scmp.lt.s32.totalorder %s32, 3
        %s588 = scalar_select %p587, %s32, 3
        %s589 = smul.addr %s588, 4
        %s590 = smul.addr %s589, 8
        %s591 = scalar_lea.vmem %s3, %s590
        %p592 = scmp.lt.s32.totalorder %s31, 1
        %s593 = scalar_select %p592, %s31, 1
        %s594 = smul.addr %s593, 4
        %s595 = smul.addr %s594, 8
        %s596 = scalar_lea.vmem %s4, %s595
        %p597 = scmp.lt.s32.totalorder %s31, 1
        %s598 = scalar_select %p597, %s31, 1
        %s599 = scalar_lea.vmem %s5, %s598
        %p600 = scmp.lt.s32.totalorder %s31, 1
        %s601 = scalar_select %p600, %s31, 1
        %s602 = smul.addr %s601, 4
        %s603 = smul.addr %s602, 8
        %s604 = scalar_lea.vmem %s6, %s603
        %p605 = scmp.lt.s32.totalorder %s31, 1
        %s606 = scalar_select %p605, %s31, 1
        %s607 = scalar_lea.vmem %s7, %s606
        %p608 = scmp.lt.s32.totalorder %s31, 1
        %s609 = scalar_select %p608, %s31, 1
        %s610 = smul.addr %s609, 4
        %s611 = smul.addr %s610, 8
        %s612 = scalar_lea.vmem %s8, %s611
        %p613 = scmp.eq.s32.totalorder %s31, 0
        // Predicated region
        $region81: #{tpu_custom_call.1} parent=63 // pred_check
          %p614 = pneg %p613
        $region82: #{tpu_custom_call.1} parent=63 // pred_check_branch
          %616 = sbr.rel (%p614) target = $region84
        $region83: #{tpu_custom_call.1} parent=63 // pred_region
          %v617 = vld [vmem:[%s489] sm:$0x3]
          %v618 = vld [vmem:[#allocation6] sm:$0xff]
          %v619 = vld [vmem:[#allocation6 + $0x8] sm:$0xff]
          %v620 = vld [vmem:[#allocation6 + $0x10] sm:$0xff]
          %v621 = vld [vmem:[#allocation6 + $0x18] sm:$0xff]
          %v622 = vld [vmem:[%s586] sm:$0x1]
          %v624 = vlaneseq
          %v625 = vshrl.u32 %v624, 7
          %v626 = vsub.s32 0, %v625
          %v627 = vrot.slane %v622, %v626
          %vm629 = vcmask 261120
          %v631 = vsel %vm629, %v617, 0
          %633 = vmatprep.subr.mxu0 0.0
          %634 = vmatpush1.msra.mxu0 %v618
          %635 = vmatprep.subr.mxu0 0.0
          %636 = vmatpush1.msra.mxu0 %v619
          %637 = vmatprep.subr.mxu0 0.0
          %638 = vmatpush1.msra.mxu0 %v620
          %639 = vmatprep.subr.mxu0 0.0
          %640 = vmatpush1.msra.mxu0 %v621
          %641 = vmatprep.subr.mxu0 0.0
          %642 = vmatpush1.msra.mxu0 0.0
          %643 = vmatprep.subr.mxu0 0.0
          %644 = vmatpush1.msra.mxu0 0.0
          %645 = vmatprep.subr.mxu0 0.0
          %646 = vmatpush1.msra.mxu0 0.0
          %647 = vmatprep.subr.mxu0 0.0
          %648 = vmatpush1.msra.mxu0 0.0
          %649 = vmatprep.subr.mxu0 0.0
          %650 = vmatpush1.msra.mxu0 0.0
          %651 = vmatprep.subr.mxu0 0.0
          %652 = vmatpush1.msra.mxu0 0.0
          %653 = vmatprep.subr.mxu0 0.0
          %654 = vmatpush1.msra.mxu0 0.0
          %655 = vmatprep.subr.mxu0 0.0
          %656 = vmatpush1.msra.mxu0 0.0
          %657 = vmatprep.subr.mxu0 0.0
          %658 = vmatpush1.msra.mxu0 0.0
          %659 = vmatprep.subr.mxu0 0.0
          %660 = vmatpush1.msra.mxu0 0.0
          %661 = vmatprep.subr.mxu0 0.0
          %662 = vmatpush1.msra.mxu0 0.0
          %663 = vmatprep.subr.mxu0 0.0
          %664 = vmatpush1.msra.mxu0 0.0
          %665 = vmatprep.subr.mxu0 0.0
          %666 = vmatpush1.msra.mxu0 0.0
          %667 = vmatprep.subr.mxu0 0.0
          %668 = vmatpush1.msra.mxu0 0.0
          %669 = vmatprep.subr.mxu0 0.0
          %670 = vmatpush1.msra.mxu0 0.0
          %671 = vmatprep.subr.mxu0 0.0
          %672 = vmatpush1.msra.mxu0 0.0
          %673 = vmatprep.subr.mxu0 0.0
          %674 = vmatpush1.msra.mxu0 0.0
          %675 = vmatprep.subr.mxu0 0.0
          %676 = vmatpush1.msra.mxu0 0.0
          %677 = vmatprep.subr.mxu0 0.0
          %678 = vmatpush1.msra.mxu0 0.0
          %679 = vmatprep.subr.mxu0 0.0
          %680 = vmatpush1.msra.mxu0 0.0
          %681 = vmatprep.subr.mxu0 0.0
          %682 = vmatpush1.msra.mxu0 0.0
          %683 = vmatprep.subr.mxu0 0.0
          %684 = vmatpush1.msra.mxu0 0.0
          %685 = vmatprep.subr.mxu0 0.0
          %686 = vmatpush1.msra.mxu0 0.0
          %687 = vmatprep.subr.mxu0 0.0
          %688 = vmatpush1.msra.mxu0 0.0
          %689 = vmatprep.subr.mxu0 0.0
          %690 = vmatpush1.msra.mxu0 0.0
          %691 = vmatprep.subr.mxu0 0.0
          %692 = vmatpush1.msra.mxu0 0.0
          %693 = vmatprep.subr.mxu0 0.0
          %694 = vmatpush1.msra.mxu0 0.0
          %695 = vmatprep.subr.mxu0 0.0
          %696 = vmatpush1.msra.mxu0 0.0
          %697 = vmatprep.mubr.f32.mxu0 0.0
          %698 = vmatmul.mubr.f32.gmra.mrb[0].mxu0 %v631
          %v699 = vpop.f32.mrb[0].mxu0
          %v700 = vadd.f32 %v627, %v699
          %v701 = vpop.f32.mrb[0].mxu0
          %702 = vdwg.mxu0
          %s703 = smul.u32 %s32, 2
          %s704 = scalar_lea.vmem [#allocation2], %s703
          %vm705 = vcmask 254976
          %706 = vst.msk [vmem:[%s704] sm:$0x3] %vm705, %v700
        $region84: #{tpu_custom_call.1} parent=63 // pred_fallthru
          _
        %s707 = smul.u32 %s32, 2
        %s708 = scalar_lea.vmem [#allocation2], %s707
        %v709 = vld [vmem:[%s708] sm:$0x3]
        %vm710 = vcmask 254976
        %v711 = vsel %vm710, %v709, 0.0
        %712 = vadd.xlane.f32.xlu0 %v711
        %v713 = vpop.xlane.xlu0 %712
        %v714 = vrcp.pop 32.0
        %v715 = vmul.f32 %v713, %v714
        %v716 = vsub.f32 %v709, %v715
        %v717 = vmul.f32 %v716, %v716
        %v718 = vsel %vm710, %v717, 0.0
        %719 = vadd.xlane.f32.xlu0 %v718
        %v720 = vpop.xlane.xlu0 %719
        %v721 = vmul.f32 %v720, %v714
        %v722 = vadd.f32 %v721, 1e-05
        %v723 = vrsqrt.pop %v722
        %v724 = vmul.f32 %v716, %v723
        %v725 = vld [vmem:[%s596] sm:$0xff]
        %v726 = vld [vmem:[%s596 + $0x8] sm:$0xff]
        %v727 = vld [vmem:[%s596 + $0x10] sm:$0xff]
        %v728 = vld [vmem:[%s596 + $0x18] sm:$0xff]
        %v729 = vld [vmem:[%s599] sm:$0x1]
        %v731 = vlaneseq
        %v732 = vshrl.u32 %v731, 7
        %v733 = vsub.s32 0, %v732
        %v734 = vrot.slane %v729, %v733
        %vm736 = vcmask 261120
        %v738 = vsel %vm736, %v724, 0
        %740 = vmatprep.subr.mxu0 0.0
        %741 = vmatpush1.msra.mxu0 %v725
        %742 = vmatprep.subr.mxu0 0.0
        %743 = vmatpush1.msra.mxu0 %v726
        %744 = vmatprep.subr.mxu0 0.0
        %745 = vmatpush1.msra.mxu0 %v727
        %746 = vmatprep.subr.mxu0 0.0
        %747 = vmatpush1.msra.mxu0 %v728
        %748 = vmatprep.subr.mxu0 0.0
        %749 = vmatpush1.msra.mxu0 0.0
        %750 = vmatprep.subr.mxu0 0.0
        %751 = vmatpush1.msra.mxu0 0.0
        %752 = vmatprep.subr.mxu0 0.0
        %753 = vmatpush1.msra.mxu0 0.0
        %754 = vmatprep.subr.mxu0 0.0
        %755 = vmatpush1.msra.mxu0 0.0
        %756 = vmatprep.subr.mxu0 0.0
        %757 = vmatpush1.msra.mxu0 0.0
        %758 = vmatprep.subr.mxu0 0.0
        %759 = vmatpush1.msra.mxu0 0.0
        %760 = vmatprep.subr.mxu0 0.0
        %761 = vmatpush1.msra.mxu0 0.0
        %762 = vmatprep.subr.mxu0 0.0
        %763 = vmatpush1.msra.mxu0 0.0
        %764 = vmatprep.subr.mxu0 0.0
        %765 = vmatpush1.msra.mxu0 0.0
        %766 = vmatprep.subr.mxu0 0.0
        %767 = vmatpush1.msra.mxu0 0.0
        %768 = vmatprep.subr.mxu0 0.0
        %769 = vmatpush1.msra.mxu0 0.0
        %770 = vmatprep.subr.mxu0 0.0
        %771 = vmatpush1.msra.mxu0 0.0
        %772 = vmatprep.subr.mxu0 0.0
        %773 = vmatpush1.msra.mxu0 0.0
        %774 = vmatprep.subr.mxu0 0.0
        %775 = vmatpush1.msra.mxu0 0.0
        %776 = vmatprep.subr.mxu0 0.0
        %777 = vmatpush1.msra.mxu0 0.0
        %778 = vmatprep.subr.mxu0 0.0
        %779 = vmatpush1.msra.mxu0 0.0
        %780 = vmatprep.subr.mxu0 0.0
        %781 = vmatpush1.msra.mxu0 0.0
        %782 = vmatprep.subr.mxu0 0.0
        %783 = vmatpush1.msra.mxu0 0.0
        %784 = vmatprep.subr.mxu0 0.0
        %785 = vmatpush1.msra.mxu0 0.0
        %786 = vmatprep.subr.mxu0 0.0
        %787 = vmatpush1.msra.mxu0 0.0
        %788 = vmatprep.subr.mxu0 0.0
        %789 = vmatpush1.msra.mxu0 0.0
        %790 = vmatprep.subr.mxu0 0.0
        %791 = vmatpush1.msra.mxu0 0.0
        %792 = vmatprep.subr.mxu0 0.0
        %793 = vmatpush1.msra.mxu0 0.0
        %794 = vmatprep.subr.mxu0 0.0
        %795 = vmatpush1.msra.mxu0 0.0
        %796 = vmatprep.subr.mxu0 0.0
        %797 = vmatpush1.msra.mxu0 0.0
        %798 = vmatprep.subr.mxu0 0.0
        %799 = vmatpush1.msra.mxu0 0.0
        %800 = vmatprep.subr.mxu0 0.0
        %801 = vmatpush1.msra.mxu0 0.0
        %802 = vmatprep.subr.mxu0 0.0
        %803 = vmatpush1.msra.mxu0 0.0
        %804 = vmatprep.mubr.f32.mxu0 0.0
        %805 = vmatmul.mubr.f32.gmra.mrb[0].mxu0 %v738
        %v806 = vpop.f32.mrb[0].mxu0
        %v807 = vadd.f32 %v734, %v806
        %v808 = vpop.f32.mrb[0].mxu0
        %809 = vdwg.mxu0
        %811 = vrot.lane.b32.xlu0 %v807, 96
        %v812 = vpop.permute.xlu0 %811
        %vm813 = vcmask 64512
        %v814 = vsel %vm813, %v807, 0
        %v816 = vsel %vm813, %v812, 0
        %818 = vmatprep.subr.mxu0 0.0
        %819 = vmatpush1.xpose.msra.mxu0 %v816
        %820 = vmatprep.subr.mxu0 0.0
        %821 = vmatpush1.xpose.msra.mxu0 0.0
        %822 = vmatprep.subr.mxu0 0.0
        %823 = vmatpush1.xpose.msra.mxu0 0.0
        %824 = vmatprep.subr.mxu0 0.0
        %825 = vmatpush1.xpose.msra.mxu0 0.0
        %826 = vmatprep.subr.mxu0 0.0
        %827 = vmatpush1.xpose.msra.mxu0 0.0
        %828 = vmatprep.subr.mxu0 0.0
        %829 = vmatpush1.xpose.msra.mxu0 0.0
        %830 = vmatprep.subr.mxu0 0.0
        %831 = vmatpush1.xpose.msra.mxu0 0.0
        %832 = vmatprep.subr.mxu0 0.0
        %833 = vmatpush1.xpose.msra.mxu0 0.0
        %834 = vmatprep.subr.mxu0 0.0
        %835 = vmatpush1.xpose.msra.mxu0 0.0
        %836 = vmatprep.subr.mxu0 0.0
        %837 = vmatpush1.xpose.msra.mxu0 0.0
        %838 = vmatprep.subr.mxu0 0.0
        %839 = vmatpush1.xpose.msra.mxu0 0.0
        %840 = vmatprep.subr.mxu0 0.0
        %841 = vmatpush1.xpose.msra.mxu0 0.0
        %842 = vmatprep.subr.mxu0 0.0
        %843 = vmatpush1.xpose.msra.mxu0 0.0
        %844 = vmatprep.subr.mxu0 0.0
        %845 = vmatpush1.xpose.msra.mxu0 0.0
        %846 = vmatprep.subr.mxu0 0.0
        %847 = vmatpush1.xpose.msra.mxu0 0.0
        %848 = vmatprep.subr.mxu0 0.0
        %849 = vmatpush1.xpose.msra.mxu0 0.0
        %850 = vmatprep.subr.mxu0 0.0
        %851 = vmatpush1.xpose.msra.mxu0 0.0
        %852 = vmatprep.subr.mxu0 0.0
        %853 = vmatpush1.xpose.msra.mxu0 0.0
        %854 = vmatprep.subr.mxu0 0.0
        %855 = vmatpush1.xpose.msra.mxu0 0.0
        %856 = vmatprep.subr.mxu0 0.0
        %857 = vmatpush1.xpose.msra.mxu0 0.0
        %858 = vmatprep.subr.mxu0 0.0
        %859 = vmatpush1.xpose.msra.mxu0 0.0
        %860 = vmatprep.subr.mxu0 0.0
        %861 = vmatpush1.xpose.msra.mxu0 0.0
        %862 = vmatprep.subr.mxu0 0.0
        %863 = vmatpush1.xpose.msra.mxu0 0.0
        %864 = vmatprep.subr.mxu0 0.0
        %865 = vmatpush1.xpose.msra.mxu0 0.0
        %866 = vmatprep.subr.mxu0 0.0
        %867 = vmatpush1.xpose.msra.mxu0 0.0
        %868 = vmatprep.subr.mxu0 0.0
        %869 = vmatpush1.xpose.msra.mxu0 0.0
        %870 = vmatprep.subr.mxu0 0.0
        %871 = vmatpush1.xpose.msra.mxu0 0.0
        %872 = vmatprep.subr.mxu0 0.0
        %873 = vmatpush1.xpose.msra.mxu0 0.0
        %874 = vmatprep.subr.mxu0 0.0
        %875 = vmatpush1.xpose.msra.mxu0 0.0
        %876 = vmatprep.subr.mxu0 0.0
        %877 = vmatpush1.xpose.msra.mxu0 0.0
        %878 = vmatprep.subr.mxu0 0.0
        %879 = vmatpush1.xpose.msra.mxu0 0.0
        %880 = vmatprep.subr.mxu0 0.0
        %881 = vmatpush1.xpose.msra.mxu0 0.0
        %882 = vmatprep.mubr.f32.mxu0 0.0
        %883 = vmatmul.mubr.f32.gmra.mrb[0].mxu0 %v814
        %v884 = vpop.f32.mrb[0].mxu0
        %v885 = vadd.f32 0.0, %v884
        %v886 = vpop.f32.mrb[0].mxu0
        %887 = vdwg.mxu0
        %v888 = vmul.f32 %v885, 0.35355338
        %vm889 = vcmask 9216
        %v890 = vsel %vm889, %v888, -inf
        %891 = vmax.xlane.f32.xlu0 %v890
        %v892 = vpop.xlane.xlu0 %891
        %v893 = vsub.f32 %v888, %v892
        %v894 = vmul.f32 %v893, 1.442695
        %v895 = vpow.pop %v894
        %v896 = vsel %vm889, %v895, 0.0
        %897 = vadd.xlane.f32.xlu0 %v896
        %v898 = vpop.xlane.xlu0 %897
        %v899 = vrcp.pop %v898
        %v900 = vmul.f32 %v895, %v899
        %901 = vrot.lane.b32.xlu0 %v807, 64
        %v902 = vpop.permute.xlu0 %901
        %vm903 = vcmask 15360
        %v905 = vsel %vm903, %v900, 0
        %vm907 = vcmask 1041408
        %v908 = vsel %vm907, %v902, 0
        %910 = vmatprep.subr.mxu0 0.0
        %911 = vmatpush1.msra.mxu0 %v908
        %912 = vmatprep.subr.mxu0 0.0
        %913 = vmatpush1.msra.mxu0 0.0
        %914 = vmatprep.subr.mxu0 0.0
        %915 = vmatpush1.msra.mxu0 0.0
        %916 = vmatprep.subr.mxu0 0.0
        %917 = vmatpush1.msra.mxu0 0.0
        %918 = vmatprep.subr.mxu0 0.0
        %919 = vmatpush1.msra.mxu0 0.0
        %920 = vmatprep.subr.mxu0 0.0
        %921 = vmatpush1.msra.mxu0 0.0
        %922 = vmatprep.subr.mxu0 0.0
        %923 = vmatpush1.msra.mxu0 0.0
        %924 = vmatprep.subr.mxu0 0.0
        %925 = vmatpush1.msra.mxu0 0.0
        %926 = vmatprep.subr.mxu0 0.0
        %927 = vmatpush1.msra.mxu0 0.0
        %928 = vmatprep.subr.mxu0 0.0
        %929 = vmatpush1.msra.mxu0 0.0
        %930 = vmatprep.subr.mxu0 0.0
        %931 = vmatpush1.msra.mxu0 0.0
        %932 = vmatprep.subr.mxu0 0.0
        %933 = vmatpush1.msra.mxu0 0.0
        %934 = vmatprep.subr.mxu0 0.0
        %935 = vmatpush1.msra.mxu0 0.0
        %936 = vmatprep.subr.mxu0 0.0
        %937 = vmatpush1.msra.mxu0 0.0
        %938 = vmatprep.subr.mxu0 0.0
        %939 = vmatpush1.msra.mxu0 0.0
        %940 = vmatprep.subr.mxu0 0.0
        %941 = vmatpush1.msra.mxu0 0.0
        %942 = vmatprep.subr.mxu0 0.0
        %943 = vmatpush1.msra.mxu0 0.0
        %944 = vmatprep.subr.mxu0 0.0
        %945 = vmatpush1.msra.mxu0 0.0
        %946 = vmatprep.subr.mxu0 0.0
        %947 = vmatpush1.msra.mxu0 0.0
        %948 = vmatprep.subr.mxu0 0.0
        %949 = vmatpush1.msra.mxu0 0.0
        %950 = vmatprep.subr.mxu0 0.0
        %951 = vmatpush1.msra.mxu0 0.0
        %952 = vmatprep.subr.mxu0 0.0
        %953 = vmatpush1.msra.mxu0 0.0
        %954 = vmatprep.subr.mxu0 0.0
        %955 = vmatpush1.msra.mxu0 0.0
        %956 = vmatprep.subr.mxu0 0.0
        %957 = vmatpush1.msra.mxu0 0.0
        %958 = vmatprep.subr.mxu0 0.0
        %959 = vmatpush1.msra.mxu0 0.0
        %960 = vmatprep.subr.mxu0 0.0
        %961 = vmatpush1.msra.mxu0 0.0
        %962 = vmatprep.subr.mxu0 0.0
        %963 = vmatpush1.msra.mxu0 0.0
        %964 = vmatprep.subr.mxu0 0.0
        %965 = vmatpush1.msra.mxu0 0.0
        %966 = vmatprep.subr.mxu0 0.0
        %967 = vmatpush1.msra.mxu0 0.0
        %968 = vmatprep.subr.mxu0 0.0
        %969 = vmatpush1.msra.mxu0 0.0
        %970 = vmatprep.subr.mxu0 0.0
        %971 = vmatpush1.msra.mxu0 0.0
        %972 = vmatprep.subr.mxu0 0.0
        %973 = vmatpush1.msra.mxu0 0.0
        %974 = vmatprep.mubr.f32.mxu0 0.0
        %975 = vmatmul.mubr.f32.gmra.mrb[0].mxu0 %v905
        %v976 = vpop.f32.mrb[0].mxu0
        %v977 = vadd.f32 0.0, %v976
        %v978 = vpop.f32.mrb[0].mxu0
        %979 = vdwg.mxu0
        %980 = vrot.lane.b32.xlu0 %v807, 120
        %v981 = vpop.permute.xlu0 %980
        %982 = vrot.lane.b32.xlu0 %v807, 88
        %v983 = vpop.permute.xlu0 %982
        %v984 = vsel %vm813, %v981, 0
        %v986 = vsel %vm813, %v983, 0
        %988 = vmatprep.subr.mxu0 0.0
        %989 = vmatpush1.xpose.msra.mxu0 %v986
        %990 = vmatprep.subr.mxu0 0.0
        %991 = vmatpush1.xpose.msra.mxu0 0.0
        %992 = vmatprep.subr.mxu0 0.0
        %993 = vmatpush1.xpose.msra.mxu0 0.0
        %994 = vmatprep.subr.mxu0 0.0
        %995 = vmatpush1.xpose.msra.mxu0 0.0
        %996 = vmatprep.subr.mxu0 0.0
        %997 = vmatpush1.xpose.msra.mxu0 0.0
        %998 = vmatprep.subr.mxu0 0.0
        %999 = vmatpush1.xpose.msra.mxu0 0.0
        %1000 = vmatprep.subr.mxu0 0.0
        %1001 = vmatpush1.xpose.msra.mxu0 0.0
        %1002 = vmatprep.subr.mxu0 0.0
        %1003 = vmatpush1.xpose.msra.mxu0 0.0
        %1004 = vmatprep.subr.mxu0 0.0
        %1005 = vmatpush1.xpose.msra.mxu0 0.0
        %1006 = vmatprep.subr.mxu0 0.0
        %1007 = vmatpush1.xpose.msra.mxu0 0.0
        %1008 = vmatprep.subr.mxu0 0.0
        %1009 = vmatpush1.xpose.msra.mxu0 0.0
        %1010 = vmatprep.subr.mxu0 0.0
        %1011 = vmatpush1.xpose.msra.mxu0 0.0
        %1012 = vmatprep.subr.mxu0 0.0
        %1013 = vmatpush1.xpose.msra.mxu0 0.0
        %1014 = vmatprep.subr.mxu0 0.0
        %1015 = vmatpush1.xpose.msra.mxu0 0.0
        %1016 = vmatprep.subr.mxu0 0.0
        %1017 = vmatpush1.xpose.msra.mxu0 0.0
        %1018 = vmatprep.subr.mxu0 0.0
        %1019 = vmatpush1.xpose.msra.mxu0 0.0
        %1020 = vmatprep.subr.mxu0 0.0
        %1021 = vmatpush1.xpose.msra.mxu0 0.0
        %1022 = vmatprep.subr.mxu0 0.0
        %1023 = vmatpush1.xpose.msra.mxu0 0.0
        %1024 = vmatprep.subr.mxu0 0.0
        %1025 = vmatpush1.xpose.msra.mxu0 0.0
        %1026 = vmatprep.subr.mxu0 0.0
        %1027 = vmatpush1.xpose.msra.mxu0 0.0
        %1028 = vmatprep.subr.mxu0 0.0
        %1029 = vmatpush1.xpose.msra.mxu0 0.0
        %1030 = vmatprep.subr.mxu0 0.0
        %1031 = vmatpush1.xpose.msra.mxu0 0.0
        %1032 = vmatprep.subr.mxu0 0.0
        %1033 = vmatpush1.xpose.msra.mxu0 0.0
        %1034 = vmatprep.subr.mxu0 0.0
        %1035 = vmatpush1.xpose.msra.mxu0 0.0
        %1036 = vmatprep.subr.mxu0 0.0
        %1037 = vmatpush1.xpose.msra.mxu0 0.0
        %1038 = vmatprep.subr.mxu0 0.0
        %1039 = vmatpush1.xpose.msra.mxu0 0.0
        %1040 = vmatprep.subr.mxu0 0.0
        %1041 = vmatpush1.xpose.msra.mxu0 0.0
        %1042 = vmatprep.subr.mxu0 0.0
        %1043 = vmatpush1.xpose.msra.mxu0 0.0
        %1044 = vmatprep.subr.mxu0 0.0
        %1045 = vmatpush1.xpose.msra.mxu0 0.0
        %1046 = vmatprep.subr.mxu0 0.0
        %1047 = vmatpush1.xpose.msra.mxu0 0.0
        %1048 = vmatprep.subr.mxu0 0.0
        %1049 = vmatpush1.xpose.msra.mxu0 0.0
        %1050 = vmatprep.subr.mxu0 0.0
        %1051 = vmatpush1.xpose.msra.mxu0 0.0
        %1052 = vmatprep.mubr.f32.mxu0 0.0
        %1053 = vmatmul.mubr.f32.gmra.mrb[0].mxu0 %v984
        %v1054 = vpop.f32.mrb[0].mxu0
        %v1055 = vadd.f32 0.0, %v1054
        %v1056 = vpop.f32.mrb[0].mxu0
        %1057 = vdwg.mxu0
        %v1058 = vmul.f32 %v1055, 0.35355338
        %v1059 = vsel %vm889, %v1058, -inf
        %1060 = vmax.xlane.f32.xlu0 %v1059
        %v1061 = vpop.xlane.xlu0 %1060
        %v1062 = vsub.f32 %v1058, %v1061
        %v1063 = vmul.f32 %v1062, 1.442695
        %v1064 = vpow.pop %v1063
        %v1065 = vsel %vm889, %v1064, 0.0
        %1066 = vadd.xlane.f32.xlu0 %v1065
        %v1067 = vpop.xlane.xlu0 %1066
        %v1068 = vrcp.pop %v1067
        %v1069 = vmul.f32 %v1064, %v1068
        %1070 = vrot.lane.b32.xlu0 %v807, 56
        %v1071 = vpop.permute.xlu0 %1070
        %v1073 = vsel %vm903, %v1069, 0
        %v1075 = vsel %vm907, %v1071, 0
        %1077 = vmatprep.subr.mxu0 0.0
        %1078 = vmatpush1.msra.mxu0 %v1075
        %1079 = vmatprep.subr.mxu0 0.0
        %1080 = vmatpush1.msra.mxu0 0.0
        %1081 = vmatprep.subr.mxu0 0.0
        %1082 = vmatpush1.msra.mxu0 0.0
        %1083 = vmatprep.subr.mxu0 0.0
        %1084 = vmatpush1.msra.mxu0 0.0
        %1085 = vmatprep.subr.mxu0 0.0
        %1086 = vmatpush1.msra.mxu0 0.0
        %1087 = vmatprep.subr.mxu0 0.0
        %1088 = vmatpush1.msra.mxu0 0.0
        %1089 = vmatprep.subr.mxu0 0.0
        %1090 = vmatpush1.msra.mxu0 0.0
        %1091 = vmatprep.subr.mxu0 0.0
        %1092 = vmatpush1.msra.mxu0 0.0
        %1093 = vmatprep.subr.mxu0 0.0
        %1094 = vmatpush1.msra.mxu0 0.0
        %1095 = vmatprep.subr.mxu0 0.0
        %1096 = vmatpush1.msra.mxu0 0.0
        %1097 = vmatprep.subr.mxu0 0.0
        %1098 = vmatpush1.msra.mxu0 0.0
        %1099 = vmatprep.subr.mxu0 0.0
        %1100 = vmatpush1.msra.mxu0 0.0
        %1101 = vmatprep.subr.mxu0 0.0
        %1102 = vmatpush1.msra.mxu0 0.0
        %1103 = vmatprep.subr.mxu0 0.0
        %1104 = vmatpush1.msra.mxu0 0.0
        %1105 = vmatprep.subr.mxu0 0.0
        %1106 = vmatpush1.msra.mxu0 0.0
        %1107 = vmatprep.subr.mxu0 0.0
        %1108 = vmatpush1.msra.mxu0 0.0
        %1109 = vmatprep.subr.mxu0 0.0
        %1110 = vmatpush1.msra.mxu0 0.0
        %1111 = vmatprep.subr.mxu0 0.0
        %1112 = vmatpush1.msra.mxu0 0.0
        %1113 = vmatprep.subr.mxu0 0.0
        %1114 = vmatpush1.msra.mxu0 0.0
        %1115 = vmatprep.subr.mxu0 0.0
        %1116 = vmatpush1.msra.mxu0 0.0
        %1117 = vmatprep.subr.mxu0 0.0
        %1118 = vmatpush1.msra.mxu0 0.0
        %1119 = vmatprep.subr.mxu0 0.0
        %1120 = vmatpush1.msra.mxu0 0.0
        %1121 = vmatprep.subr.mxu0 0.0
        %1122 = vmatpush1.msra.mxu0 0.0
        %1123 = vmatprep.subr.mxu0 0.0
        %1124 = vmatpush1.msra.mxu0 0.0
        %1125 = vmatprep.subr.mxu0 0.0
        %1126 = vmatpush1.msra.mxu0 0.0
        %1127 = vmatprep.subr.mxu0 0.0
        %1128 = vmatpush1.msra.mxu0 0.0
        %1129 = vmatprep.subr.mxu0 0.0
        %1130 = vmatpush1.msra.mxu0 0.0
        %1131 = vmatprep.subr.mxu0 0.0
        %1132 = vmatpush1.msra.mxu0 0.0
        %1133 = vmatprep.subr.mxu0 0.0
        %1134 = vmatpush1.msra.mxu0 0.0
        %1135 = vmatprep.subr.mxu0 0.0
        %1136 = vmatpush1.msra.mxu0 0.0
        %1137 = vmatprep.subr.mxu0 0.0
        %1138 = vmatpush1.msra.mxu0 0.0
        %1139 = vmatprep.subr.mxu0 0.0
        %1140 = vmatpush1.msra.mxu0 0.0
        %1141 = vmatprep.mubr.f32.mxu0 0.0
        %1142 = vmatmul.mubr.f32.gmra.mrb[0].mxu0 %v1073
        %v1143 = vpop.f32.mrb[0].mxu0
        %v1144 = vadd.f32 0.0, %v1143
        %v1145 = vpop.f32.mrb[0].mxu0
        %1146 = vdwg.mxu0
        %1147 = vrot.lane.b32.xlu0 %v807, 112
        %v1148 = vpop.permute.xlu0 %1147
        %1149 = vrot.lane.b32.xlu0 %v807, 80
        %v1150 = vpop.permute.xlu0 %1149
        %v1151 = vsel %vm813, %v1148, 0
        %v1153 = vsel %vm813, %v1150, 0
        %1155 = vmatprep.subr.mxu0 0.0
        %1156 = vmatpush1.xpose.msra.mxu0 %v1153
        %1157 = vmatprep.subr.mxu0 0.0
        %1158 = vmatpush1.xpose.msra.mxu0 0.0
        %1159 = vmatprep.subr.mxu0 0.0
        %1160 = vmatpush1.xpose.msra.mxu0 0.0
        %1161 = vmatprep.subr.mxu0 0.0
        %1162 = vmatpush1.xpose.msra.mxu0 0.0
        %1163 = vmatprep.subr.mxu0 0.0
        %1164 = vmatpush1.xpose.msra.mxu0 0.0
        %1165 = vmatprep.subr.mxu0 0.0
        %1166 = vmatpush1.xpose.msra.mxu0 0.0
        %1167 = vmatprep.subr.mxu0 0.0
        %1168 = vmatpush1.xpose.msra.mxu0 0.0
        %1169 = vmatprep.subr.mxu0 0.0
        %1170 = vmatpush1.xpose.msra.mxu0 0.0
        %1171 = vmatprep.subr.mxu0 0.0
        %1172 = vmatpush1.xpose.msra.mxu0 0.0
        %1173 = vmatprep.subr.mxu0 0.0
        %1174 = vmatpush1.xpose.msra.mxu0 0.0
        %1175 = vmatprep.subr.mxu0 0.0
        %1176 = vmatpush1.xpose.msra.mxu0 0.0
        %1177 = vmatprep.subr.mxu0 0.0
        %1178 = vmatpush1.xpose.msra.mxu0 0.0
        %1179 = vmatprep.subr.mxu0 0.0
        %1180 = vmatpush1.xpose.msra.mxu0 0.0
        %1181 = vmatprep.subr.mxu0 0.0
        %1182 = vmatpush1.xpose.msra.mxu0 0.0
        %1183 = vmatprep.subr.mxu0 0.0
        %1184 = vmatpush1.xpose.msra.mxu0 0.0
        %1185 = vmatprep.subr.mxu0 0.0
        %1186 = vmatpush1.xpose.msra.mxu0 0.0
        %1187 = vmatprep.subr.mxu0 0.0
        %1188 = vmatpush1.xpose.msra.mxu0 0.0
        %1189 = vmatprep.subr.mxu0 0.0
        %1190 = vmatpush1.xpose.msra.mxu0 0.0
        %1191 = vmatprep.subr.mxu0 0.0
        %1192 = vmatpush1.xpose.msra.mxu0 0.0
        %1193 = vmatprep.subr.mxu0 0.0
        %1194 = vmatpush1.xpose.msra.mxu0 0.0
        %1195 = vmatprep.subr.mxu0 0.0
        %1196 = vmatpush1.xpose.msra.mxu0 0.0
        %1197 = vmatprep.subr.mxu0 0.0
        %1198 = vmatpush1.xpose.msra.mxu0 0.0
        %1199 = vmatprep.subr.mxu0 0.0
        %1200 = vmatpush1.xpose.msra.mxu0 0.0
        %1201 = vmatprep.subr.mxu0 0.0
        %1202 = vmatpush1.xpose.msra.mxu0 0.0
        %1203 = vmatprep.subr.mxu0 0.0
        %1204 = vmatpush1.xpose.msra.mxu0 0.0
        %1205 = vmatprep.subr.mxu0 0.0
        %1206 = vmatpush1.xpose.msra.mxu0 0.0
        %1207 = vmatprep.subr.mxu0 0.0
        %1208 = vmatpush1.xpose.msra.mxu0 0.0
        %1209 = vmatprep.subr.mxu0 0.0
        %1210 = vmatpush1.xpose.msra.mxu0 0.0
        %1211 = vmatprep.subr.mxu0 0.0
        %1212 = vmatpush1.xpose.msra.mxu0 0.0
        %1213 = vmatprep.subr.mxu0 0.0
        %1214 = vmatpush1.xpose.msra.mxu0 0.0
        %1215 = vmatprep.subr.mxu0 0.0
        %1216 = vmatpush1.xpose.msra.mxu0 0.0
        %1217 = vmatprep.subr.mxu0 0.0
        %1218 = vmatpush1.xpose.msra.mxu0 0.0
        %1219 = vmatprep.mubr.f32.mxu0 0.0
        %1220 = vmatmul.mubr.f32.gmra.mrb[0].mxu0 %v1151
        %v1221 = vpop.f32.mrb[0].mxu0
        %v1222 = vadd.f32 0.0, %v1221
        %v1223 = vpop.f32.mrb[0].mxu0
        %1224 = vdwg.mxu0
        %v1225 = vmul.f32 %v1222, 0.35355338
        %v1226 = vsel %vm889, %v1225, -inf
        %1227 = vmax.xlane.f32.xlu0 %v1226
        %v1228 = vpop.xlane.xlu0 %1227
        %v1229 = vsub.f32 %v1225, %v1228
        %v1230 = vmul.f32 %v1229, 1.442695
        %v1231 = vpow.pop %v1230
        %v1232 = vsel %vm889, %v1231, 0.0
        %1233 = vadd.xlane.f32.xlu0 %v1232
        %v1234 = vpop.xlane.xlu0 %1233
        %v1235 = vrcp.pop %v1234
        %v1236 = vmul.f32 %v1231, %v1235
        %1237 = vrot.lane.b32.xlu0 %v807, 48
        %v1238 = vpop.permute.xlu0 %1237
        %v1240 = vsel %vm903, %v1236, 0
        %v1242 = vsel %vm907, %v1238, 0
        %1244 = vmatprep.subr.mxu0 0.0
        %1245 = vmatpush1.msra.mxu0 %v1242
        %1246 = vmatprep.subr.mxu0 0.0
        %1247 = vmatpush1.msra.mxu0 0.0
        %1248 = vmatprep.subr.mxu0 0.0
        %1249 = vmatpush1.msra.mxu0 0.0
        %1250 = vmatprep.subr.mxu0 0.0
        %1251 = vmatpush1.msra.mxu0 0.0
        %1252 = vmatprep.subr.mxu0 0.0
        %1253 = vmatpush1.msra.mxu0 0.0
        %1254 = vmatprep.subr.mxu0 0.0
        %1255 = vmatpush1.msra.mxu0 0.0
        %1256 = vmatprep.subr.mxu0 0.0
        %1257 = vmatpush1.msra.mxu0 0.0
        %1258 = vmatprep.subr.mxu0 0.0
        %1259 = vmatpush1.msra.mxu0 0.0
        %1260 = vmatprep.subr.mxu0 0.0
        %1261 = vmatpush1.msra.mxu0 0.0
        %1262 = vmatprep.subr.mxu0 0.0
        %1263 = vmatpush1.msra.mxu0 0.0
        %1264 = vmatprep.subr.mxu0 0.0
        %1265 = vmatpush1.msra.mxu0 0.0
        %1266 = vmatprep.subr.mxu0 0.0
        %1267 = vmatpush1.msra.mxu0 0.0
        %1268 = vmatprep.subr.mxu0 0.0
        %1269 = vmatpush1.msra.mxu0 0.0
        %1270 = vmatprep.subr.mxu0 0.0
        %1271 = vmatpush1.msra.mxu0 0.0
        %1272 = vmatprep.subr.mxu0 0.0
        %1273 = vmatpush1.msra.mxu0 0.0
        %1274 = vmatprep.subr.mxu0 0.0
        %1275 = vmatpush1.msra.mxu0 0.0
        %1276 = vmatprep.subr.mxu0 0.0
        %1277 = vmatpush1.msra.mxu0 0.0
        %1278 = vmatprep.subr.mxu0 0.0
        %1279 = vmatpush1.msra.mxu0 0.0
        %1280 = vmatprep.subr.mxu0 0.0
        %1281 = vmatpush1.msra.mxu0 0.0
        %1282 = vmatprep.subr.mxu0 0.0
        %1283 = vmatpush1.msra.mxu0 0.0
        %1284 = vmatprep.subr.mxu0 0.0
        %1285 = vmatpush1.msra.mxu0 0.0
        %1286 = vmatprep.subr.mxu0 0.0
        %1287 = vmatpush1.msra.mxu0 0.0
        %1288 = vmatprep.subr.mxu0 0.0
        %1289 = vmatpush1.msra.mxu0 0.0
        %1290 = vmatprep.subr.mxu0 0.0
        %1291 = vmatpush1.msra.mxu0 0.0
        %1292 = vmatprep.subr.mxu0 0.0
        %1293 = vmatpush1.msra.mxu0 0.0
        %1294 = vmatprep.subr.mxu0 0.0
        %1295 = vmatpush1.msra.mxu0 0.0
        %1296 = vmatprep.subr.mxu0 0.0
        %1297 = vmatpush1.msra.mxu0 0.0
        %1298 = vmatprep.subr.mxu0 0.0
        %1299 = vmatpush1.msra.mxu0 0.0
        %1300 = vmatprep.subr.mxu0 0.0
        %1301 = vmatpush1.msra.mxu0 0.0
        %1302 = vmatprep.subr.mxu0 0.0
        %1303 = vmatpush1.msra.mxu0 0.0
        %1304 = vmatprep.subr.mxu0 0.0
        %1305 = vmatpush1.msra.mxu0 0.0
        %1306 = vmatprep.subr.mxu0 0.0
        %1307 = vmatpush1.msra.mxu0 0.0
        %1308 = vmatprep.mubr.f32.mxu0 0.0
        %1309 = vmatmul.mubr.f32.gmra.mrb[0].mxu0 %v1240
        %v1310 = vpop.f32.mrb[0].mxu0
        %v1311 = vadd.f32 0.0, %v1310
        %v1312 = vpop.f32.mrb[0].mxu0
        %1313 = vdwg.mxu0
        %1314 = vrot.lane.b32.xlu0 %v807, 104
        %v1315 = vpop.permute.xlu0 %1314
        %1316 = vrot.lane.b32.xlu0 %v807, 72
        %v1317 = vpop.permute.xlu0 %1316
        %v1318 = vsel %vm813, %v1315, 0
        %v1320 = vsel %vm813, %v1317, 0
        %1322 = vmatprep.subr.mxu0 0.0
        %1323 = vmatpush1.xpose.msra.mxu0 %v1320
        %1324 = vmatprep.subr.mxu0 0.0
        %1325 = vmatpush1.xpose.msra.mxu0 0.0
        %1326 = vmatprep.subr.mxu0 0.0
        %1327 = vmatpush1.xpose.msra.mxu0 0.0
        %1328 = vmatprep.subr.mxu0 0.0
        %1329 = vmatpush1.xpose.msra.mxu0 0.0
        %1330 = vmatprep.subr.mxu0 0.0
        %1331 = vmatpush1.xpose.msra.mxu0 0.0
        %1332 = vmatprep.subr.mxu0 0.0
        %1333 = vmatpush1.xpose.msra.mxu0 0.0
        %1334 = vmatprep.subr.mxu0 0.0
        %1335 = vmatpush1.xpose.msra.mxu0 0.0
        %1336 = vmatprep.subr.mxu0 0.0
        %1337 = vmatpush1.xpose.msra.mxu0 0.0
        %1338 = vmatprep.subr.mxu0 0.0
        %1339 = vmatpush1.xpose.msra.mxu0 0.0
        %1340 = vmatprep.subr.mxu0 0.0
        %1341 = vmatpush1.xpose.msra.mxu0 0.0
        %1342 = vmatprep.subr.mxu0 0.0
        %1343 = vmatpush1.xpose.msra.mxu0 0.0
        %1344 = vmatprep.subr.mxu0 0.0
        %1345 = vmatpush1.xpose.msra.mxu0 0.0
        %1346 = vmatprep.subr.mxu0 0.0
        %1347 = vmatpush1.xpose.msra.mxu0 0.0
        %1348 = vmatprep.subr.mxu0 0.0
        %1349 = vmatpush1.xpose.msra.mxu0 0.0
        %1350 = vmatprep.subr.mxu0 0.0
        %1351 = vmatpush1.xpose.msra.mxu0 0.0
        %1352 = vmatprep.subr.mxu0 0.0
        %1353 = vmatpush1.xpose.msra.mxu0 0.0
        %1354 = vmatprep.subr.mxu0 0.0
        %1355 = vmatpush1.xpose.msra.mxu0 0.0
        %1356 = vmatprep.subr.mxu0 0.0
        %1357 = vmatpush1.xpose.msra.mxu0 0.0
        %1358 = vmatprep.subr.mxu0 0.0
        %1359 = vmatpush1.xpose.msra.mxu0 0.0
        %1360 = vmatprep.subr.mxu0 0.0
        %1361 = vmatpush1.xpose.msra.mxu0 0.0
        %1362 = vmatprep.subr.mxu0 0.0
        %1363 = vmatpush1.xpose.msra.mxu0 0.0
        %1364 = vmatprep.subr.mxu0 0.0
        %1365 = vmatpush1.xpose.msra.mxu0 0.0
        %1366 = vmatprep.subr.mxu0 0.0
        %1367 = vmatpush1.xpose.msra.mxu0 0.0
        %1368 = vmatprep.subr.mxu0 0.0
        %1369 = vmatpush1.xpose.msra.mxu0 0.0
        %1370 = vmatprep.subr.mxu0 0.0
        %1371 = vmatpush1.xpose.msra.mxu0 0.0
        %1372 = vmatprep.subr.mxu0 0.0
        %1373 = vmatpush1.xpose.msra.mxu0 0.0
        %1374 = vmatprep.subr.mxu0 0.0
        %1375 = vmatpush1.xpose.msra.mxu0 0.0
        %1376 = vmatprep.subr.mxu0 0.0
        %1377 = vmatpush1.xpose.msra.mxu0 0.0
        %1378 = vmatprep.subr.mxu0 0.0
        %1379 = vmatpush1.xpose.msra.mxu0 0.0
        %1380 = vmatprep.subr.mxu0 0.0
        %1381 = vmatpush1.xpose.msra.mxu0 0.0
        %1382 = vmatprep.subr.mxu0 0.0
        %1383 = vmatpush1.xpose.msra.mxu0 0.0
        %1384 = vmatprep.subr.mxu0 0.0
        %1385 = vmatpush1.xpose.msra.mxu0 0.0
        %1386 = vmatprep.mubr.f32.mxu0 0.0
        %1387 = vmatmul.mubr.f32.gmra.mrb[0].mxu0 %v1318
        %v1388 = vpop.f32.mrb[0].mxu0
        %v1389 = vadd.f32 0.0, %v1388
        %v1390 = vpop.f32.mrb[0].mxu0
        %1391 = vdwg.mxu0
        %v1392 = vmul.f32 %v1389, 0.35355338
        %v1393 = vsel %vm889, %v1392, -inf
        %1394 = vmax.xlane.f32.xlu0 %v1393
        %v1395 = vpop.xlane.xlu0 %1394
        %v1396 = vsub.f32 %v1392, %v1395
        %v1397 = vmul.f32 %v1396, 1.442695
        %v1398 = vpow.pop %v1397
        %v1399 = vsel %vm889, %v1398, 0.0
        %1400 = vadd.xlane.f32.xlu0 %v1399
        %v1401 = vpop.xlane.xlu0 %1400
        %v1402 = vrcp.pop %v1401
        %v1403 = vmul.f32 %v1398, %v1402
        %1404 = vrot.lane.b32.xlu0 %v807, 40
        %v1405 = vpop.permute.xlu0 %1404
        %v1407 = vsel %vm903, %v1403, 0
        %v1409 = vsel %vm907, %v1405, 0
        %1411 = vmatprep.subr.mxu0 0.0
        %1412 = vmatpush1.msra.mxu0 %v1409
        %1413 = vmatprep.subr.mxu0 0.0
        %1414 = vmatpush1.msra.mxu0 0.0
        %1415 = vmatprep.subr.mxu0 0.0
        %1416 = vmatpush1.msra.mxu0 0.0
        %1417 = vmatprep.subr.mxu0 0.0
        %1418 = vmatpush1.msra.mxu0 0.0
        %1419 = vmatprep.subr.mxu0 0.0
        %1420 = vmatpush1.msra.mxu0 0.0
        %1421 = vmatprep.subr.mxu0 0.0
        %1422 = vmatpush1.msra.mxu0 0.0
        %1423 = vmatprep.subr.mxu0 0.0
        %1424 = vmatpush1.msra.mxu0 0.0
        %1425 = vmatprep.subr.mxu0 0.0
        %1426 = vmatpush1.msra.mxu0 0.0
        %1427 = vmatprep.subr.mxu0 0.0
        %1428 = vmatpush1.msra.mxu0 0.0
        %1429 = vmatprep.subr.mxu0 0.0
        %1430 = vmatpush1.msra.mxu0 0.0
        %1431 = vmatprep.subr.mxu0 0.0
        %1432 = vmatpush1.msra.mxu0 0.0
        %1433 = vmatprep.subr.mxu0 0.0
        %1434 = vmatpush1.msra.mxu0 0.0
        %1435 = vmatprep.subr.mxu0 0.0
        %1436 = vmatpush1.msra.mxu0 0.0
        %1437 = vmatprep.subr.mxu0 0.0
        %1438 = vmatpush1.msra.mxu0 0.0
        %1439 = vmatprep.subr.mxu0 0.0
        %1440 = vmatpush1.msra.mxu0 0.0
        %1441 = vmatprep.subr.mxu0 0.0
        %1442 = vmatpush1.msra.mxu0 0.0
        %1443 = vmatprep.subr.mxu0 0.0
        %1444 = vmatpush1.msra.mxu0 0.0
        %1445 = vmatprep.subr.mxu0 0.0
        %1446 = vmatpush1.msra.mxu0 0.0
        %1447 = vmatprep.subr.mxu0 0.0
        %1448 = vmatpush1.msra.mxu0 0.0
        %1449 = vmatprep.subr.mxu0 0.0
        %1450 = vmatpush1.msra.mxu0 0.0
        %1451 = vmatprep.subr.mxu0 0.0
        %1452 = vmatpush1.msra.mxu0 0.0
        %1453 = vmatprep.subr.mxu0 0.0
        %1454 = vmatpush1.msra.mxu0 0.0
        %1455 = vmatprep.subr.mxu0 0.0
        %1456 = vmatpush1.msra.mxu0 0.0
        %1457 = vmatprep.subr.mxu0 0.0
        %1458 = vmatpush1.msra.mxu0 0.0
        %1459 = vmatprep.subr.mxu0 0.0
        %1460 = vmatpush1.msra.mxu0 0.0
        %1461 = vmatprep.subr.mxu0 0.0
        %1462 = vmatpush1.msra.mxu0 0.0
        %1463 = vmatprep.subr.mxu0 0.0
        %1464 = vmatpush1.msra.mxu0 0.0
        %1465 = vmatprep.subr.mxu0 0.0
        %1466 = vmatpush1.msra.mxu0 0.0
        %1467 = vmatprep.subr.mxu0 0.0
        %1468 = vmatpush1.msra.mxu0 0.0
        %1469 = vmatprep.subr.mxu0 0.0
        %1470 = vmatpush1.msra.mxu0 0.0
        %1471 = vmatprep.subr.mxu0 0.0
        %1472 = vmatpush1.msra.mxu0 0.0
        %1473 = vmatprep.subr.mxu0 0.0
        %1474 = vmatpush1.msra.mxu0 0.0
        %1475 = vmatprep.mubr.f32.mxu0 0.0
        %1476 = vmatmul.mubr.f32.gmra.mrb[0].mxu0 %v1407
        %v1477 = vpop.f32.mrb[0].mxu0
        %v1478 = vadd.f32 0.0, %v1477
        %v1479 = vpop.f32.mrb[0].mxu0
        %1480 = vdwg.mxu0
        %1482 = vrot.lane.b32.xlu0 %v1144, 8
        %v1483 = vpop.permute.xlu0 %1482
        %1486 = vrot.lane.b32.xlu0 %v1311, 16
        %v1487 = vpop.permute.xlu0 %1486
        %1490 = vrot.lane.b32.xlu0 %v1478, 24
        %v1491 = vpop.permute.xlu0 %1490
        %v1493 = vsel %vm813, %v977, %v1483
        %vm1494 = vcmask 130048
        %v1495 = vsel %vm1494, %v1493, %v1487
        %vm1496 = vcmask 195584
        %v1497 = vsel %vm1496, %v1495, %v1491
        %v1498 = vld [vmem:[%s604] sm:$0xff]
        %v1499 = vld [vmem:[%s604 + $0x8] sm:$0xff]
        %v1500 = vld [vmem:[%s604 + $0x10] sm:$0xff]
        %v1501 = vld [vmem:[%s604 + $0x18] sm:$0xff]
        %v1503 = vsel %vm736, %v1497, 0
        %1505 = vmatprep.subr.mxu0 0.0
        %1506 = vmatpush1.msra.mxu0 %v1498
        %1507 = vmatprep.subr.mxu0 0.0
        %1508 = vmatpush1.msra.mxu0 %v1499
        %1509 = vmatprep.subr.mxu0 0.0
        %1510 = vmatpush1.msra.mxu0 %v1500
        %1511 = vmatprep.subr.mxu0 0.0
        %1512 = vmatpush1.msra.mxu0 %v1501
        %1513 = vmatprep.subr.mxu0 0.0
        %1514 = vmatpush1.msra.mxu0 0.0
        %1515 = vmatprep.subr.mxu0 0.0
        %1516 = vmatpush1.msra.mxu0 0.0
        %1517 = vmatprep.subr.mxu0 0.0
        %1518 = vmatpush1.msra.mxu0 0.0
        %1519 = vmatprep.subr.mxu0 0.0
        %1520 = vmatpush1.msra.mxu0 0.0
        %1521 = vmatprep.subr.mxu0 0.0
        %1522 = vmatpush1.msra.mxu0 0.0
        %1523 = vmatprep.subr.mxu0 0.0
        %1524 = vmatpush1.msra.mxu0 0.0
        %1525 = vmatprep.subr.mxu0 0.0
        %1526 = vmatpush1.msra.mxu0 0.0
        %1527 = vmatprep.subr.mxu0 0.0
        %1528 = vmatpush1.msra.mxu0 0.0
        %1529 = vmatprep.subr.mxu0 0.0
        %1530 = vmatpush1.msra.mxu0 0.0
        %1531 = vmatprep.subr.mxu0 0.0
        %1532 = vmatpush1.msra.mxu0 0.0
        %1533 = vmatprep.subr.mxu0 0.0
        %1534 = vmatpush1.msra.mxu0 0.0
        %1535 = vmatprep.subr.mxu0 0.0
        %1536 = vmatpush1.msra.mxu0 0.0
        %1537 = vmatprep.subr.mxu0 0.0
        %1538 = vmatpush1.msra.mxu0 0.0
        %1539 = vmatprep.subr.mxu0 0.0
        %1540 = vmatpush1.msra.mxu0 0.0
        %1541 = vmatprep.subr.mxu0 0.0
        %1542 = vmatpush1.msra.mxu0 0.0
        %1543 = vmatprep.subr.mxu0 0.0
        %1544 = vmatpush1.msra.mxu0 0.0
        %1545 = vmatprep.subr.mxu0 0.0
        %1546 = vmatpush1.msra.mxu0 0.0
        %1547 = vmatprep.subr.mxu0 0.0
        %1548 = vmatpush1.msra.mxu0 0.0
        %1549 = vmatprep.subr.mxu0 0.0
        %1550 = vmatpush1.msra.mxu0 0.0
        %1551 = vmatprep.subr.mxu0 0.0
        %1552 = vmatpush1.msra.mxu0 0.0
        %1553 = vmatprep.subr.mxu0 0.0
        %1554 = vmatpush1.msra.mxu0 0.0
        %1555 = vmatprep.subr.mxu0 0.0
        %1556 = vmatpush1.msra.mxu0 0.0
        %1557 = vmatprep.subr.mxu0 0.0
        %1558 = vmatpush1.msra.mxu0 0.0
        %1559 = vmatprep.subr.mxu0 0.0
        %1560 = vmatpush1.msra.mxu0 0.0
        %1561 = vmatprep.subr.mxu0 0.0
        %1562 = vmatpush1.msra.mxu0 0.0
        %1563 = vmatprep.subr.mxu0 0.0
        %1564 = vmatpush1.msra.mxu0 0.0
        %1565 = vmatprep.subr.mxu0 0.0
        %1566 = vmatpush1.msra.mxu0 0.0
        %1567 = vmatprep.subr.mxu0 0.0
        %1568 = vmatpush1.msra.mxu0 0.0
        %1569 = vmatprep.mubr.f32.mxu0 0.0
        %1570 = vmatmul.mubr.f32.gmra.mrb[0].mxu0 %v1503
        %v1571 = vpop.f32.mrb[0].mxu0
        %v1572 = vadd.f32 0.0, %v1571
        %v1573 = vpop.f32.mrb[0].mxu0
        %1574 = vdwg.mxu0
        %v1575 = vadd.f32 %v709, %v1572
        %v1576 = vld [vmem:[%s607] sm:$0x1]
        %v1578 = vlaneseq
        %v1579 = vshrl.u32 %v1578, 7
        %v1580 = vsub.s32 0, %v1579
        %v1581 = vrot.slane %v1576, %v1580
        %v1583 = vadd.f32 %v1575, %v1581
        %v1584 = vsel %vm710, %v1583, 0.0
        %1585 = vadd.xlane.f32.xlu0 %v1584
        %v1586 = vpop.xlane.xlu0 %1585
        %v1587 = vmul.f32 %v1586, %v714
        %v1588 = vsub.f32 %v1583, %v1587
        %v1589 = vmul.f32 %v1588, %v1588
        %v1590 = vsel %vm710, %v1589, 0.0
        %1591 = vadd.xlane.f32.xlu0 %v1590
        %v1592 = vpop.xlane.xlu0 %1591
        %v1593 = vmul.f32 %v1592, %v714
        %v1594 = vadd.f32 %v1593, 1e-05
        %v1595 = vrsqrt.pop %v1594
        %v1596 = vmul.f32 %v1588, %v1595
        %v1597 = vld [vmem:[%s612] sm:$0xff]
        %v1598 = vld [vmem:[%s612 + $0x8] sm:$0xff]
        %v1599 = vld [vmem:[%s612 + $0x10] sm:$0xff]
        %v1600 = vld [vmem:[%s612 + $0x18] sm:$0xff]
        %v1602 = vsel %vm736, %v1596, 0
        %1604 = vmatprep.subr.mxu0 0.0
        %1605 = vmatpush1.msra.mxu0 %v1597
        %1606 = vmatprep.subr.mxu0 0.0
        %1607 = vmatpush1.msra.mxu0 %v1598
        %1608 = vmatprep.subr.mxu0 0.0
        %1609 = vmatpush1.msra.mxu0 %v1599
        %1610 = vmatprep.subr.mxu0 0.0
        %1611 = vmatpush1.msra.mxu0 %v1600
        %1612 = vmatprep.subr.mxu0 0.0
        %1613 = vmatpush1.msra.mxu0 0.0
        %1614 = vmatprep.subr.mxu0 0.0
        %1615 = vmatpush1.msra.mxu0 0.0
        %1616 = vmatprep.subr.mxu0 0.0
        %1617 = vmatpush1.msra.mxu0 0.0
        %1618 = vmatprep.subr.mxu0 0.0
        %1619 = vmatpush1.msra.mxu0 0.0
        %1620 = vmatprep.subr.mxu0 0.0
        %1621 = vmatpush1.msra.mxu0 0.0
        %1622 = vmatprep.subr.mxu0 0.0
        %1623 = vmatpush1.msra.mxu0 0.0
        %1624 = vmatprep.subr.mxu0 0.0
        %1625 = vmatpush1.msra.mxu0 0.0
        %1626 = vmatprep.subr.mxu0 0.0
        %1627 = vmatpush1.msra.mxu0 0.0
        %1628 = vmatprep.subr.mxu0 0.0
        %1629 = vmatpush1.msra.mxu0 0.0
        %1630 = vmatprep.subr.mxu0 0.0
        %1631 = vmatpush1.msra.mxu0 0.0
        %1632 = vmatprep.subr.mxu0 0.0
        %1633 = vmatpush1.msra.mxu0 0.0
        %1634 = vmatprep.subr.mxu0 0.0
        %1635 = vmatpush1.msra.mxu0 0.0
        %1636 = vmatprep.subr.mxu0 0.0
        %1637 = vmatpush1.msra.mxu0 0.0
        %1638 = vmatprep.subr.mxu0 0.0
        %1639 = vmatpush1.msra.mxu0 0.0
        %1640 = vmatprep.subr.mxu0 0.0
        %1641 = vmatpush1.msra.mxu0 0.0
        %1642 = vmatprep.subr.mxu0 0.0
        %1643 = vmatpush1.msra.mxu0 0.0
        %1644 = vmatprep.subr.mxu0 0.0
        %1645 = vmatpush1.msra.mxu0 0.0
        %1646 = vmatprep.subr.mxu0 0.0
        %1647 = vmatpush1.msra.mxu0 0.0
        %1648 = vmatprep.subr.mxu0 0.0
        %1649 = vmatpush1.msra.mxu0 0.0
        %1650 = vmatprep.subr.mxu0 0.0
        %1651 = vmatpush1.msra.mxu0 0.0
        %1652 = vmatprep.subr.mxu0 0.0
        %1653 = vmatpush1.msra.mxu0 0.0
        %1654 = vmatprep.subr.mxu0 0.0
        %1655 = vmatpush1.msra.mxu0 0.0
        %1656 = vmatprep.subr.mxu0 0.0
        %1657 = vmatpush1.msra.mxu0 0.0
        %1658 = vmatprep.subr.mxu0 0.0
        %1659 = vmatpush1.msra.mxu0 0.0
        %1660 = vmatprep.subr.mxu0 0.0
        %1661 = vmatpush1.msra.mxu0 0.0
        %1662 = vmatprep.subr.mxu0 0.0
        %1663 = vmatpush1.msra.mxu0 0.0
        %1664 = vmatprep.subr.mxu0 0.0
        %1665 = vmatpush1.msra.mxu0 0.0
        %1666 = vmatprep.subr.mxu0 0.0
        %1667 = vmatpush1.msra.mxu0 0.0
        %1668 = vmatprep.mubr.f32.mxu0 0.0
        %1669 = vmatmul.mubr.f32.gmra.mrb[0].mxu0 %v1602
        %v1670 = vpop.f32.mrb[0].mxu0
        %v1671 = vadd.f32 0.0, %v1670
        %v1672 = vpop.f32.mrb[0].mxu0
        %1673 = vdwg.mxu0
        %v1674 = vxor.u32 %v1671, 2147483648
        %v1675 = vmul.f32 %v1674, 1.442695
        %v1676 = vpow.pop %v1675
        %v1677 = vadd.f32 %v1676, 1.0
        %v1678 = vrcp.pop %v1677
        %v1679 = vmul.f32 1.0, %v1678
        %v1680 = vmul.f32 %v1671, %v1679
        %v1681 = vld [vmem:[%s502] sm:$0xff]
        %v1682 = vld [vmem:[%s502 + $0x8] sm:$0xff]
        %v1683 = vld [vmem:[%s502 + $0x10] sm:$0xff]
        %v1684 = vld [vmem:[%s502 + $0x18] sm:$0xff]
        %v1686 = vsel %vm736, %v1680, 0
        %1688 = vmatprep.subr.mxu0 0.0
        %1689 = vmatpush1.msra.mxu0 %v1681
        %1690 = vmatprep.subr.mxu0 0.0
        %1691 = vmatpush1.msra.mxu0 %v1682
        %1692 = vmatprep.subr.mxu0 0.0
        %1693 = vmatpush1.msra.mxu0 %v1683
        %1694 = vmatprep.subr.mxu0 0.0
        %1695 = vmatpush1.msra.mxu0 %v1684
        %1696 = vmatprep.subr.mxu0 0.0
        %1697 = vmatpush1.msra.mxu0 0.0
        %1698 = vmatprep.subr.mxu0 0.0
        %1699 = vmatpush1.msra.mxu0 0.0
        %1700 = vmatprep.subr.mxu0 0.0
        %1701 = vmatpush1.msra.mxu0 0.0
        %1702 = vmatprep.subr.mxu0 0.0
        %1703 = vmatpush1.msra.mxu0 0.0
        %1704 = vmatprep.subr.mxu0 0.0
        %1705 = vmatpush1.msra.mxu0 0.0
        %1706 = vmatprep.subr.mxu0 0.0
        %1707 = vmatpush1.msra.mxu0 0.0
        %1708 = vmatprep.subr.mxu0 0.0
        %1709 = vmatpush1.msra.mxu0 0.0
        %1710 = vmatprep.subr.mxu0 0.0
        %1711 = vmatpush1.msra.mxu0 0.0
        %1712 = vmatprep.subr.mxu0 0.0
        %1713 = vmatpush1.msra.mxu0 0.0
        %1714 = vmatprep.subr.mxu0 0.0
        %1715 = vmatpush1.msra.mxu0 0.0
        %1716 = vmatprep.subr.mxu0 0.0
        %1717 = vmatpush1.msra.mxu0 0.0
        %1718 = vmatprep.subr.mxu0 0.0
        %1719 = vmatpush1.msra.mxu0 0.0
        %1720 = vmatprep.subr.mxu0 0.0
        %1721 = vmatpush1.msra.mxu0 0.0
        %1722 = vmatprep.subr.mxu0 0.0
        %1723 = vmatpush1.msra.mxu0 0.0
        %1724 = vmatprep.subr.mxu0 0.0
        %1725 = vmatpush1.msra.mxu0 0.0
        %1726 = vmatprep.subr.mxu0 0.0
        %1727 = vmatpush1.msra.mxu0 0.0
        %1728 = vmatprep.subr.mxu0 0.0
        %1729 = vmatpush1.msra.mxu0 0.0
        %1730 = vmatprep.subr.mxu0 0.0
        %1731 = vmatpush1.msra.mxu0 0.0
        %1732 = vmatprep.subr.mxu0 0.0
        %1733 = vmatpush1.msra.mxu0 0.0
        %1734 = vmatprep.subr.mxu0 0.0
        %1735 = vmatpush1.msra.mxu0 0.0
        %1736 = vmatprep.subr.mxu0 0.0
        %1737 = vmatpush1.msra.mxu0 0.0
        %1738 = vmatprep.subr.mxu0 0.0
        %1739 = vmatpush1.msra.mxu0 0.0
        %1740 = vmatprep.subr.mxu0 0.0
        %1741 = vmatpush1.msra.mxu0 0.0
        %1742 = vmatprep.subr.mxu0 0.0
        %1743 = vmatpush1.msra.mxu0 0.0
        %1744 = vmatprep.subr.mxu0 0.0
        %1745 = vmatpush1.msra.mxu0 0.0
        %1746 = vmatprep.subr.mxu0 0.0
        %1747 = vmatpush1.msra.mxu0 0.0
        %1748 = vmatprep.subr.mxu0 0.0
        %1749 = vmatpush1.msra.mxu0 0.0
        %1750 = vmatprep.subr.mxu0 0.0
        %1751 = vmatpush1.msra.mxu0 0.0
        %1752 = vmatprep.mubr.f32.mxu0 0.0
        %1753 = vmatmul.mubr.f32.gmra.mrb[0].mxu0 %v1686
        %v1754 = vpop.f32.mrb[0].mxu0
        %v1755 = vadd.f32 0.0, %v1754
        %v1756 = vpop.f32.mrb[0].mxu0
        %1757 = vdwg.mxu0
        %v1758 = vmul.f32 %v1680, %v1755
        %v1759 = vld [vmem:[%s511] sm:$0xff]
        %v1760 = vld [vmem:[%s511 + $0x8] sm:$0xff]
        %v1761 = vld [vmem:[%s511 + $0x10] sm:$0xff]
        %v1762 = vld [vmem:[%s511 + $0x18] sm:$0xff]
        %v1764 = vsel %vm736, %v1758, 0
        %1766 = vmatprep.subr.mxu0 0.0
        %1767 = vmatpush1.msra.mxu0 %v1759
        %1768 = vmatprep.subr.mxu0 0.0
        %1769 = vmatpush1.msra.mxu0 %v1760
        %1770 = vmatprep.subr.mxu0 0.0
        %1771 = vmatpush1.msra.mxu0 %v1761
        %1772 = vmatprep.subr.mxu0 0.0
        %1773 = vmatpush1.msra.mxu0 %v1762
        %1774 = vmatprep.subr.mxu0 0.0
        %1775 = vmatpush1.msra.mxu0 0.0
        %1776 = vmatprep.subr.mxu0 0.0
        %1777 = vmatpush1.msra.mxu0 0.0
        %1778 = vmatprep.subr.mxu0 0.0
        %1779 = vmatpush1.msra.mxu0 0.0
        %1780 = vmatprep.subr.mxu0 0.0
        %1781 = vmatpush1.msra.mxu0 0.0
        %1782 = vmatprep.subr.mxu0 0.0
        %1783 = vmatpush1.msra.mxu0 0.0
        %1784 = vmatprep.subr.mxu0 0.0
        %1785 = vmatpush1.msra.mxu0 0.0
        %1786 = vmatprep.subr.mxu0 0.0
        %1787 = vmatpush1.msra.mxu0 0.0
        %1788 = vmatprep.subr.mxu0 0.0
        %1789 = vmatpush1.msra.mxu0 0.0
        %1790 = vmatprep.subr.mxu0 0.0
        %1791 = vmatpush1.msra.mxu0 0.0
        %1792 = vmatprep.subr.mxu0 0.0
        %1793 = vmatpush1.msra.mxu0 0.0
        %1794 = vmatprep.subr.mxu0 0.0
        %1795 = vmatpush1.msra.mxu0 0.0
        %1796 = vmatprep.subr.mxu0 0.0
        %1797 = vmatpush1.msra.mxu0 0.0
        %1798 = vmatprep.subr.mxu0 0.0
        %1799 = vmatpush1.msra.mxu0 0.0
        %1800 = vmatprep.subr.mxu0 0.0
        %1801 = vmatpush1.msra.mxu0 0.0
        %1802 = vmatprep.subr.mxu0 0.0
        %1803 = vmatpush1.msra.mxu0 0.0
        %1804 = vmatprep.subr.mxu0 0.0
        %1805 = vmatpush1.msra.mxu0 0.0
        %1806 = vmatprep.subr.mxu0 0.0
        %1807 = vmatpush1.msra.mxu0 0.0
        %1808 = vmatprep.subr.mxu0 0.0
        %1809 = vmatpush1.msra.mxu0 0.0
        %1810 = vmatprep.subr.mxu0 0.0
        %1811 = vmatpush1.msra.mxu0 0.0
        %1812 = vmatprep.subr.mxu0 0.0
        %1813 = vmatpush1.msra.mxu0 0.0
        %1814 = vmatprep.subr.mxu0 0.0
        %1815 = vmatpush1.msra.mxu0 0.0
        %1816 = vmatprep.subr.mxu0 0.0
        %1817 = vmatpush1.msra.mxu0 0.0
        %1818 = vmatprep.subr.mxu0 0.0
        %1819 = vmatpush1.msra.mxu0 0.0
        %1820 = vmatprep.subr.mxu0 0.0
        %1821 = vmatpush1.msra.mxu0 0.0
        %1822 = vmatprep.subr.mxu0 0.0
        %1823 = vmatpush1.msra.mxu0 0.0
        %1824 = vmatprep.subr.mxu0 0.0
        %1825 = vmatpush1.msra.mxu0 0.0
        %1826 = vmatprep.subr.mxu0 0.0
        %1827 = vmatpush1.msra.mxu0 0.0
        %1828 = vmatprep.subr.mxu0 0.0
        %1829 = vmatpush1.msra.mxu0 0.0
        %1830 = vmatprep.mubr.f32.mxu0 0.0
        %1831 = vmatmul.mubr.f32.gmra.mrb[0].mxu0 %v1764
        %v1832 = vpop.f32.mrb[0].mxu0
        %v1833 = vadd.f32 0.0, %v1832
        %v1834 = vpop.f32.mrb[0].mxu0
        %1835 = vdwg.mxu0
        %v1836 = vadd.f32 %v1583, %v1833
        %1837 = vst.msk [vmem:[%s708] sm:$0x3] %vm710, %v1836
        %p1838 = scmp.eq.s32.totalorder %s31, 1
        // Predicated region
        $region85: #{tpu_custom_call.1} parent=63 // pred_check
          %p1839 = pneg %p1838
        $region86: #{tpu_custom_call.1} parent=63 // pred_check_branch
          %1841 = sbr.rel (%p1839) target = $region88
        $region87: #{tpu_custom_call.1} parent=63 // pred_region
          %v1842 = vld [vmem:[%s591] sm:$0xff]
          %v1843 = vld [vmem:[%s591 + $0x8] sm:$0xff]
          %v1844 = vld [vmem:[%s591 + $0x10] sm:$0xff]
          %v1845 = vld [vmem:[%s591 + $0x18] sm:$0xff]
          %v1847 = vsel %vm736, %v1836, 0
          %1849 = vmatprep.subr.mxu0 0.0
          %1850 = vmatpush1.msra.mxu0 %v1842
          %1851 = vmatprep.subr.mxu0 0.0
          %1852 = vmatpush1.msra.mxu0 %v1843
          %1853 = vmatprep.subr.mxu0 0.0
          %1854 = vmatpush1.msra.mxu0 %v1844
          %1855 = vmatprep.subr.mxu0 0.0
          %1856 = vmatpush1.msra.mxu0 %v1845
          %1857 = vmatprep.subr.mxu0 0.0
          %1858 = vmatpush1.msra.mxu0 0.0
          %1859 = vmatprep.subr.mxu0 0.0
          %1860 = vmatpush1.msra.mxu0 0.0
          %1861 = vmatprep.subr.mxu0 0.0
          %1862 = vmatpush1.msra.mxu0 0.0
          %1863 = vmatprep.subr.mxu0 0.0
          %1864 = vmatpush1.msra.mxu0 0.0
          %1865 = vmatprep.subr.mxu0 0.0
          %1866 = vmatpush1.msra.mxu0 0.0
          %1867 = vmatprep.subr.mxu0 0.0
          %1868 = vmatpush1.msra.mxu0 0.0
          %1869 = vmatprep.subr.mxu0 0.0
          %1870 = vmatpush1.msra.mxu0 0.0
          %1871 = vmatprep.subr.mxu0 0.0
          %1872 = vmatpush1.msra.mxu0 0.0
          %1873 = vmatprep.subr.mxu0 0.0
          %1874 = vmatpush1.msra.mxu0 0.0
          %1875 = vmatprep.subr.mxu0 0.0
          %1876 = vmatpush1.msra.mxu0 0.0
          %1877 = vmatprep.subr.mxu0 0.0
          %1878 = vmatpush1.msra.mxu0 0.0
          %1879 = vmatprep.subr.mxu0 0.0
          %1880 = vmatpush1.msra.mxu0 0.0
          %1881 = vmatprep.subr.mxu0 0.0
          %1882 = vmatpush1.msra.mxu0 0.0
          %1883 = vmatprep.subr.mxu0 0.0
          %1884 = vmatpush1.msra.mxu0 0.0
          %1885 = vmatprep.subr.mxu0 0.0
          %1886 = vmatpush1.msra.mxu0 0.0
          %1887 = vmatprep.subr.mxu0 0.0
          %1888 = vmatpush1.msra.mxu0 0.0
          %1889 = vmatprep.subr.mxu0 0.0
          %1890 = vmatpush1.msra.mxu0 0.0
          %1891 = vmatprep.subr.mxu0 0.0
          %1892 = vmatpush1.msra.mxu0 0.0
          %1893 = vmatprep.subr.mxu0 0.0
          %1894 = vmatpush1.msra.mxu0 0.0
          %1895 = vmatprep.subr.mxu0 0.0
          %1896 = vmatpush1.msra.mxu0 0.0
          %1897 = vmatprep.subr.mxu0 0.0
          %1898 = vmatpush1.msra.mxu0 0.0
          %1899 = vmatprep.subr.mxu0 0.0
          %1900 = vmatpush1.msra.mxu0 0.0
          %1901 = vmatprep.subr.mxu0 0.0
          %1902 = vmatpush1.msra.mxu0 0.0
          %1903 = vmatprep.subr.mxu0 0.0
          %1904 = vmatpush1.msra.mxu0 0.0
          %1905 = vmatprep.subr.mxu0 0.0
          %1906 = vmatpush1.msra.mxu0 0.0
          %1907 = vmatprep.subr.mxu0 0.0
          %1908 = vmatpush1.msra.mxu0 0.0
          %1909 = vmatprep.subr.mxu0 0.0
          %1910 = vmatpush1.msra.mxu0 0.0
          %1911 = vmatprep.subr.mxu0 0.0
          %1912 = vmatpush1.msra.mxu0 0.0
          %1913 = vmatprep.mubr.f32.mxu0 0.0
          %1914 = vmatmul.mubr.f32.gmra.mrb[0].mxu0 %v1847
          %v1915 = vpop.f32.mrb[0].mxu0
          %v1916 = vadd.f32 0.0, %v1915
          %v1917 = vpop.f32.mrb[0].mxu0
          %1918 = vdwg.mxu0
          %p1919 = scmp.eq.s32.totalorder %s32, 0
          // Predicated region
          $region89: #{tpu_custom_call.1} parent=87 // pred_check
            %p1920 = pneg %p1919
          $region90: #{tpu_custom_call.1} parent=87 // pred_check_branch
            %1922 = sbr.rel (%p1920) target = $region92
          $region91: #{tpu_custom_call.1} parent=87 // pred_region
            %vm1923 = vcmask 123904
            %1924 = vst.msk [vmem:[#allocation10] sm:$0x3] %vm1923, %v1916
          $region92: #{tpu_custom_call.1} parent=87 // pred_fallthru
            _
          %p1925 = scmp.ne.s32.totalorder %s32, 0
          // Predicated region
          $region93: #{tpu_custom_call.1} parent=87 // pred_check
            %p1926 = pneg %p1925
          $region94: #{tpu_custom_call.1} parent=87 // pred_check_branch
            %1928 = sbr.rel (%p1926) target = $region96
          $region95: #{tpu_custom_call.1} parent=87 // pred_region
            %v1929 = vld [vmem:[#allocation10] sm:$0x3]
            %v1930 = vadd.f32 %v1929, %v1916
            %vm1931 = vcmask 123904
            %1932 = vst.msk [vmem:[#allocation10] sm:$0x3] %vm1931, %v1930
          $region96: #{tpu_custom_call.1} parent=87 // pred_fallthru
            _
        $region88: #{tpu_custom_call.1} parent=63 // pred_fallthru
          _
        // Predicated region
        $region97: #{tpu_custom_call.1} parent=63 // pred_check
          %p1933 = pneg %p333
        $region98: #{tpu_custom_call.1} parent=63 // pred_check_branch
          %1935 = sbr.rel (%p1933) target = $region100
        $region99: #{tpu_custom_call.1} parent=63 // pred_region
          %s1937 = ssub.s32 32, 32
          %1938 = vsyncadd [#allocation5], %s1937
          %s1940 = sshll.u32 [#allocation10], 4
          %s1941 = int_to_ptr.vmem [resolvable:$true] %s1940
          %1943 = dma.vmem_to_hbm [thread:$0]  %s1941, 32, %s11, [#allocation5]
        $region100: #{tpu_custom_call.1} parent=63 // pred_fallthru
          _
        // Predicated region
        $region101: #{tpu_custom_call.1} parent=63 // pred_check
          %p1944 = pneg %p333
        $region102: #{tpu_custom_call.1} parent=63 // pred_check_branch
          %1946 = sbr.rel (%p1944) target = $region104
        $region103: #{tpu_custom_call.1} parent=63 // pred_region
          %1947 = dma.done [#allocation5], 32
        $region104: #{tpu_custom_call.1} parent=63 // pred_fallthru
          _
      $region64: #{tpu_custom_call.1} parent=5 // pred_fallthru
        _
      %p1948 = scmp.le.s32.totalorder 2, %s22
      // Predicated region
      $region105: #{tpu_custom_call.1} parent=5 // pred_check
        %p1949 = pneg %p1948
      $region106: #{tpu_custom_call.1} parent=5 // pred_check_branch
        %1951 = sbr.rel (%p1949) target = $region108
      $region107: #{tpu_custom_call.1} parent=5 // pred_region
        %s1952 = ssub.s32 %s22, 2
      $region108: #{tpu_custom_call.1} parent=5 // pred_fallthru
        _
    $region6: #{tpu_custom_call.1} parent=1 // loop_footer
      %s26 = sadd.s32 1, %s22
    $region7: #{tpu_custom_call.1} parent=1 // loop_footer_branch
      %21 = sbr.rel target = $region3
    $region8: #{tpu_custom_call.1} parent=1 // loop_exit
      _
    %1953 = vsyncpa [#allocation4], 1
    %s1954 = scalar_lea.sflag [#allocation4], 1
    %1955 = vsyncpa %s1954, 1
    %1956 = vsyncpa [#allocation7], 1
    %1957 = vsyncpa [#allocation5], 1
    %s1958 = scalar_lea.sflag [#allocation5], 1
    %1959 = vsyncpa %s1958, 1

</llo_original>
